<compile_context>
chip_gen: v5e
topology: v5e:2x2
jax: 0.10.0
libtpu: 0.0.40
codegen_flags: <defaults>
</compile_context>

<pallas_src>
import functools

import jax
import jax.numpy as jnp
import numpy as np
from jax.experimental import pallas as pl
from jax.experimental.pallas import tpu as pltpu

BN_EPS = 1e-5
LRELU_SLOPE = 0.01


def _conv_frame(xval, w, t0, taps):
    """One output frame of a temporal conv as an MXU matmul.

    xval : (Cin, T, HW) f32      (one batch element, value already in vregs/VMEM)
    w    : (Cout, taps*Cin) f32  (column index = tau*Cin + ci)
    Returns (Cout, HW) f32 = sum_{tau,ci} w[:, tau*Cin+ci] * x[ci, t0+tau, :].
    """
    patch = jnp.concatenate([xval[:, t0 + tau, :] for tau in range(taps)], axis=0)
    return jnp.dot(w, patch, preferred_element_type=jnp.float32)


def rnet_stats_kernel(x_ref, w1_ref, w2_ref, stats_ref, *, k):
    """Pass 1: per-batch-element partial BatchNorm sums for both conv branches.

    x_ref     : (Cin, T, HW)
    w1_ref    : (Cout, k*Cin)   main conv (unused when k == 2)
    w2_ref    : (Cout, 2*Cin)   conv_k2
    stats_ref : (Cout, 4)       columns = [sum1, sumsq1, sum2, sumsq2]
    """
    x = x_ref[...]
    t = x.shape[1]
    cout = w1_ref.shape[0]

    def branch_sums(w_ref, taps, t_start, t_len):
        w = w_ref[...]                                   # hoisted weight load
        s = jnp.zeros((cout, 1), jnp.float32)
        ss = jnp.zeros((cout, 1), jnp.float32)
        for i in range(t_len):                           # small static unroll over T
            y = _conv_frame(x, w, t_start + i, taps)     # MXU
            s = s + jnp.sum(y, axis=-1, keepdims=True)
            ss = ss + jnp.sum(y * y, axis=-1, keepdims=True)
        return s, ss

    if k == 2:
        z = jnp.zeros((cout, 1), jnp.float32)
        s1, ss1 = z, z                                   # branch 1 unused for k == 2
        s2, ss2 = branch_sums(w2_ref, 2, 0, t - 1)
    else:
        s1, ss1 = branch_sums(w1_ref, k, 0, t - k + 1)       # conv
        s2, ss2 = branch_sums(w2_ref, 2, t - k, k - 1)       # conv_k2 on last k frames
    stats_ref[...] = jnp.concatenate([s1, ss1, s2, ss2], axis=1)


def rnet_apply_kernel(x_ref, w1_ref, w2_ref, p1_ref, p2_ref, out_ref, *, k):
    """Pass 2: recompute conv, apply folded BN (scale/shift) + LeakyReLU, assemble the
    RNet output for one batch element and write it with one lane-dense store.

    p1_ref / p2_ref : (Cout, 2) columns = [scale, shift] of the folded BatchNorm.
    out_ref         : (Cout, T_out, HW)
    """
    x = x_ref[...]
    t = x.shape[1]

    def branch(w_ref, p_ref, t_start, taps, t_len):
        w = w_ref[...]
        scale = p_ref[:, 0:1]                            # (Cout, 1)
        shift = p_ref[:, 1:2]
        frames = []
        for i in range(t_len):
            y = _conv_frame(x, w, t_start + i, taps)     # MXU
            yn = y * scale + shift                       # folded training-mode BN
            frames.append(jnp.where(yn > 0, yn, LRELU_SLOPE * yn))   # LeakyReLU(0.01)
        return frames

    if k == 2:
        # forward() returns conv_k2(x) directly when the temporal kernel size == 2.
        frames = branch(w2_ref, p2_ref, 0, 2, t - 1)
    else:
        t1 = t - k + 1
        a1 = branch(w1_ref, p1_ref, 0, k, t1)            # conv
        a2 = branch(w2_ref, p2_ref, t - k, 2, k - 1)     # conv_k2 on last k frames
        a1_last = a1[t1 - 1]
        # cat([conv[:-1], conv[-1:] - ReplicationPad3d(conv_k2)], dim=T)
        frames = a1[:t1 - 1] + [a1_last - y2 for y2 in a2] + [a1_last - a2[k - 2]]
    out_ref[...] = jnp.stack(frames, axis=1)             # (Cout, T_out, HW), full store


@functools.partial(jax.jit, static_argnames=("k",))
def rnet_forward(x, params, k):
    n, cin, t, h, w = x.shape
    hw = h * w
    cout = params["w1"].shape[0]
    t_out = t - 1 if k == 2 else t
    t1 = t - k + 1

    # Contiguous-merge reshape only (no transpose, no HBM round trip).
    xr = x.reshape(n, cin, t, hw).astype(jnp.float32)
    # Weight column index = tau*Cin + ci (matches the in-kernel patch ordering); tiny.
    w1r = jnp.transpose(params["w1"], (0, 2, 1)).reshape(cout, -1).astype(jnp.float32)
    w2r = jnp.transpose(params["w2"], (0, 2, 1)).reshape(cout, 2 * cin).astype(jnp.float32)

    x_spec = pl.BlockSpec((None, cin, t, hw), lambda i: (i, 0, 0, 0))
    w1_spec = pl.BlockSpec((cout, w1r.shape[1]), lambda i: (0, 0))
    w2_spec = pl.BlockSpec((cout, 2 * cin), lambda i: (0, 0))
    cparams = pltpu.CompilerParams(
        dimension_semantics=("parallel",),               # megacore-shard the batch on v7x
        vmem_limit_bytes=48 * 1024 * 1024,               # fits v7x 64 MiB; harmless on v5e/v6e
    )

    # Pass 1: conv + per-batch-element partial BN sums (tiny output).
    stats = pl.pallas_call(
        functools.partial(rnet_stats_kernel, k=k),
        grid=(n,),
        in_specs=[x_spec, w1_spec, w2_spec],
        out_specs=pl.BlockSpec((None, cout, 4), lambda i: (i, 0, 0)),
        out_shape=jax.ShapeDtypeStruct((n, cout, 4), jnp.float32),
        compiler_params=cparams,
    )(xr, w1r, w2r)

    # Tiny XLA reduce + fold of training-mode BatchNorm (biased variance) into scale/shift.
    tot = stats.sum(axis=0)                              # (Cout, 4)
    cnt1 = float(n * t1 * hw) if k > 2 else 1.0          # branch 1 unused when k == 2
    cnt2 = float(n * (k - 1) * hw) if k > 2 else float(n * (t - 1) * hw)

    def fold(s, ss, cnt, g, be):
        mean = s / cnt
        var = ss / cnt - mean * mean
        scale = g.astype(jnp.float32) * jax.lax.rsqrt(var + BN_EPS)
        shift = be.astype(jnp.float32) - mean * scale
        return jnp.stack([scale, shift], axis=1)         # (Cout, 2)

    p1 = fold(tot[:, 0], tot[:, 1], cnt1, params["g1"], params["be1"])
    p2 = fold(tot[:, 2], tot[:, 3], cnt2, params["g2"], params["be2"])

    # Pass 2: recompute conv, apply folded BN + LeakyReLU, write output directly in
    # (N, Cout, T_out, H*W) order.
    out = pl.pallas_call(
        functools.partial(rnet_apply_kernel, k=k),
        grid=(n,),
        in_specs=[x_spec, w1_spec, w2_spec,
                  pl.BlockSpec((cout, 2), lambda i: (0, 0)),
                  pl.BlockSpec((cout, 2), lambda i: (0, 0))],
        out_specs=pl.BlockSpec((None, cout, t_out, hw), lambda i: (i, 0, 0, 0)),
        out_shape=jax.ShapeDtypeStruct((n, cout, t_out, hw), jnp.float32),
        compiler_params=cparams,
    )(xr, w1r, w2r, p1, p2)

    return out.reshape(n, cout, t_out, h, w)             # contiguous split, free


def rnet_ref(x, params, k):
    """Pure-JAX reference of the PyTorch forward (training-mode BatchNorm, with bias)."""
    dn = ("NCDHW", "OIDHW", "NCDHW")

    def conv(xx, w3, b):
        w5 = w3[:, :, :, None, None]
        y = jax.lax.conv_general_dilated(xx, w5, (1, 1, 1), "VALID",
                                         dimension_numbers=dn)
        return y + b[None, :, None, None, None]

    def bn_lrelu(y, g, be):
        mean = y.mean(axis=(0, 2, 3, 4), keepdims=True)
        var = jnp.square(y - mean).mean(axis=(0, 2, 3, 4), keepdims=True)
        yn = ((y - mean) / jnp.sqrt(var + BN_EPS)
              * g[None, :, None, None, None] + be[None, :, None, None, None])
        return jnp.where(yn > 0, yn, LRELU_SLOPE * yn)

    conv_k2 = lambda xx: bn_lrelu(conv(xx, params["w2"], params["b2"]),
                                  params["g2"], params["be2"])
    if k == 2:
        return conv_k2(x)
    oc = bn_lrelu(conv(x, params["w1"], params["b1"]), params["g1"], params["be1"])
    ok2 = conv_k2(x[:, :, -k:, :, :])
    ok2 = jnp.concatenate([ok2, ok2[:, :, -1:, :, :]], axis=2)   # ReplicationPad3d
    return jnp.concatenate([oc[:, :, :-1], oc[:, :, -1:] - ok2], axis=2)


if __name__ == "__main__":
    N, CIN, COUT, T, H, W, K = 2, 4, 4, 8, 16, 16, 3

    key = jax.random.PRNGKey(0)
    ks = jax.random.split(key, 9)
    x = jax.random.normal(ks[0], (N, CIN, T, H, W), jnp.float32)
    params = {
        "w1": 0.3 * jax.random.normal(ks[1], (COUT, CIN, K), jnp.float32),
        "b1": 0.1 * jax.random.normal(ks[2], (COUT,), jnp.float32),
        "w2": 0.3 * jax.random.normal(ks[3], (COUT, CIN, 2), jnp.float32),
        "b2": 0.1 * jax.random.normal(ks[4], (COUT,), jnp.float32),
        "g1": 1.0 + 0.1 * jax.random.normal(ks[5], (COUT,), jnp.float32),
        "be1": 0.1 * jax.random.normal(ks[6], (COUT,), jnp.float32),
        "g2": 1.0 + 0.1 * jax.random.normal(ks[7], (COUT,), jnp.float32),
        "be2": 0.1 * jax.random.normal(ks[8], (COUT,), jnp.float32),
    }

    # Main path: temporal kernel size k = 3 (> 2).
    out = jax.block_until_ready(rnet_forward(x, params, K))
    ref = jax.block_until_ready(rnet_ref(x, params, K))
    assert out.shape == (N, COUT, T, H, W)
    np.testing.assert_allclose(np.asarray(out), np.asarray(ref), atol=1e-3, rtol=1e-3)

    # k == 2 path: forward() returns conv_k2(x) directly (T_out = T - 1).
    params2 = dict(params, w1=params["w1"][:, :, :2])
    out2 = jax.block_until_ready(rnet_forward(x, params2, 2))
    ref2 = jax.block_until_ready(rnet_ref(x, params2, 2))
    assert out2.shape == (N, COUT, T - 1, H, W)
    np.testing.assert_allclose(np.asarray(out2), np.asarray(ref2), atol=1e-3, rtol=1e-3)

    print("KERNEL_OK")
</pallas_src>

<mosaic_0001>
module attributes {stable_mosaic.version = 11 : i64} {
  func.func @rnet_stats_kernel(%arg0: i32, %arg1: memref<1x4x8x256xf32, #tpu.memory_space<vmem>>, %arg2: memref<4x12xf32, #tpu.memory_space<vmem>>, %arg3: memref<4x8xf32, #tpu.memory_space<vmem>>, %arg4: memref<1x4x4xf32, #tpu.memory_space<vmem>>) attributes {dimension_semantics = [#tpu.dimension_semantics<parallel>], iteration_bounds = array<i64: 2>, scalar_prefetch = 0 : i64, scratch_operands = 0 : i64, tpu.core_type = #tpu.core_type<tc>, window_params = [{transform_indices = @transform_0, window_bounds = array<i64: 1, 4, 8, 256>}, {pipeline_mode = #tpu.pipeline_mode<synchronous>, transform_indices = @transform_1, window_bounds = array<i64: 4, 12>}, {pipeline_mode = #tpu.pipeline_mode<synchronous>, transform_indices = @transform_2, window_bounds = array<i64: 4, 8>}, {transform_indices = @transform_3, window_bounds = array<i64: 1, 4, 4>}]} {
    %c0 = arith.constant 0 : index
    %c0_0 = arith.constant 0 : index
    %c0_1 = arith.constant 0 : index
    %c0_2 = arith.constant 0 : index
    %0 = vector.load %arg1[%c0, %c0_0, %c0_1, %c0_2] : memref<1x4x8x256xf32, #tpu.memory_space<vmem>>, vector<1x4x8x256xf32>
    %1 = vector.shape_cast %0 : vector<1x4x8x256xf32> to vector<4x8x256xf32>
    %c0_3 = arith.constant 0 : index
    %c0_4 = arith.constant 0 : index
    %2 = vector.load %arg2[%c0_3, %c0_4] : memref<4x12xf32, #tpu.memory_space<vmem>>, vector<4x12xf32>
    %cst = arith.constant 0.000000e+00 : f32
    %3 = vector.broadcast %cst : f32 to vector<4x1xf32>
    %cst_5 = arith.constant 0.000000e+00 : f32
    %4 = vector.broadcast %cst_5 : f32 to vector<4x1xf32>
    %5 = vector.extract_strided_slice %1 {offsets = [0, 0, 0], sizes = [4, 1, 256], strides = [1, 1, 1]} : vector<4x8x256xf32> to vector<4x1x256xf32>
    %6 = vector.shape_cast %5 : vector<4x1x256xf32> to vector<4x256xf32>
    %7 = vector.extract_strided_slice %1 {offsets = [0, 1, 0], sizes = [4, 1, 256], strides = [1, 1, 1]} : vector<4x8x256xf32> to vector<4x1x256xf32>
    %8 = vector.shape_cast %7 : vector<4x1x256xf32> to vector<4x256xf32>
    %9 = vector.extract_strided_slice %1 {offsets = [0, 2, 0], sizes = [4, 1, 256], strides = [1, 1, 1]} : vector<4x8x256xf32> to vector<4x1x256xf32>
    %10 = vector.shape_cast %9 : vector<4x1x256xf32> to vector<4x256xf32>
    %11 = tpu.concatenate %6, %8, %10 in 0 : vector<4x256xf32>, vector<4x256xf32>, vector<4x256xf32> -> vector<12x256xf32>
    %cst_6 = arith.constant dense<0.000000e+00> : vector<4x256xf32>
    %12 = tpu.matmul %2, %11, %cst_6 {dimension_numbers = #tpu.dot_dimension_numbers<[1], [0], [0], [1], [0, 0, 1, 1], [], []>} : vector<4x12xf32>, vector<12x256xf32>, vector<4x256xf32> -> vector<4x256xf32>
    %cst_7 = arith.constant dense<0.000000e+00> : vector<4xf32>
    %13 = vector.multi_reduction <add>, %12, %cst_7 [1] : vector<4x256xf32> to vector<4xf32>
    %14 = vector.shape_cast %13 : vector<4xf32> to vector<4x1xf32>
    %15 = arith.addf %3, %14 : vector<4x1xf32>
    %16 = arith.mulf %12, %12 : vector<4x256xf32>
    %cst_8 = arith.constant dense<0.000000e+00> : vector<4xf32>
    %17 = vector.multi_reduction <add>, %16, %cst_8 [1] : vector<4x256xf32> to vector<4xf32>
    %18 = vector.shape_cast %17 : vector<4xf32> to vector<4x1xf32>
    %19 = arith.addf %4, %18 : vector<4x1xf32>
    %20 = vector.extract_strided_slice %1 {offsets = [0, 1, 0], sizes = [4, 1, 256], strides = [1, 1, 1]} : vector<4x8x256xf32> to vector<4x1x256xf32>
    %21 = vector.shape_cast %20 : vector<4x1x256xf32> to vector<4x256xf32>
    %22 = vector.extract_strided_slice %1 {offsets = [0, 2, 0], sizes = [4, 1, 256], strides = [1, 1, 1]} : vector<4x8x256xf32> to vector<4x1x256xf32>
    %23 = vector.shape_cast %22 : vector<4x1x256xf32> to vector<4x256xf32>
    %24 = vector.extract_strided_slice %1 {offsets = [0, 3, 0], sizes = [4, 1, 256], strides = [1, 1, 1]} : vector<4x8x256xf32> to vector<4x1x256xf32>
    %25 = vector.shape_cast %24 : vector<4x1x256xf32> to vector<4x256xf32>
    %26 = tpu.concatenate %21, %23, %25 in 0 : vector<4x256xf32>, vector<4x256xf32>, vector<4x256xf32> -> vector<12x256xf32>
    %cst_9 = arith.constant dense<0.000000e+00> : vector<4x256xf32>
    %27 = tpu.matmul %2, %26, %cst_9 {dimension_numbers = #tpu.dot_dimension_numbers<[1], [0], [0], [1], [0, 0, 1, 1], [], []>} : vector<4x12xf32>, vector<12x256xf32>, vector<4x256xf32> -> vector<4x256xf32>
    %cst_10 = arith.constant dense<0.000000e+00> : vector<4xf32>
    %28 = vector.multi_reduction <add>, %27, %cst_10 [1] : vector<4x256xf32> to vector<4xf32>
    %29 = vector.shape_cast %28 : vector<4xf32> to vector<4x1xf32>
    %30 = arith.addf %15, %29 : vector<4x1xf32>
    %31 = arith.mulf %27, %27 : vector<4x256xf32>
    %cst_11 = arith.constant dense<0.000000e+00> : vector<4xf32>
    %32 = vector.multi_reduction <add>, %31, %cst_11 [1] : vector<4x256xf32> to vector<4xf32>
    %33 = vector.shape_cast %32 : vector<4xf32> to vector<4x1xf32>
    %34 = arith.addf %19, %33 : vector<4x1xf32>
    %35 = vector.extract_strided_slice %1 {offsets = [0, 2, 0], sizes = [4, 1, 256], strides = [1, 1, 1]} : vector<4x8x256xf32> to vector<4x1x256xf32>
    %36 = vector.shape_cast %35 : vector<4x1x256xf32> to vector<4x256xf32>
    %37 = vector.extract_strided_slice %1 {offsets = [0, 3, 0], sizes = [4, 1, 256], strides = [1, 1, 1]} : vector<4x8x256xf32> to vector<4x1x256xf32>
    %38 = vector.shape_cast %37 : vector<4x1x256xf32> to vector<4x256xf32>
    %39 = vector.extract_strided_slice %1 {offsets = [0, 4, 0], sizes = [4, 1, 256], strides = [1, 1, 1]} : vector<4x8x256xf32> to vector<4x1x256xf32>
    %40 = vector.shape_cast %39 : vector<4x1x256xf32> to vector<4x256xf32>
    %41 = tpu.concatenate %36, %38, %40 in 0 : vector<4x256xf32>, vector<4x256xf32>, vector<4x256xf32> -> vector<12x256xf32>
    %cst_12 = arith.constant dense<0.000000e+00> : vector<4x256xf32>
    %42 = tpu.matmul %2, %41, %cst_12 {dimension_numbers = #tpu.dot_dimension_numbers<[1], [0], [0], [1], [0, 0, 1, 1], [], []>} : vector<4x12xf32>, vector<12x256xf32>, vector<4x256xf32> -> vector<4x256xf32>
    %cst_13 = arith.constant dense<0.000000e+00> : vector<4xf32>
    %43 = vector.multi_reduction <add>, %42, %cst_13 [1] : vector<4x256xf32> to vector<4xf32>
    %44 = vector.shape_cast %43 : vector<4xf32> to vector<4x1xf32>
    %45 = arith.addf %30, %44 : vector<4x1xf32>
    %46 = arith.mulf %42, %42 : vector<4x256xf32>
    %cst_14 = arith.constant dense<0.000000e+00> : vector<4xf32>
    %47 = vector.multi_reduction <add>, %46, %cst_14 [1] : vector<4x256xf32> to vector<4xf32>
    %48 = vector.shape_cast %47 : vector<4xf32> to vector<4x1xf32>
    %49 = arith.addf %34, %48 : vector<4x1xf32>
    %50 = vector.extract_strided_slice %1 {offsets = [0, 3, 0], sizes = [4, 1, 256], strides = [1, 1, 1]} : vector<4x8x256xf32> to vector<4x1x256xf32>
    %51 = vector.shape_cast %50 : vector<4x1x256xf32> to vector<4x256xf32>
    %52 = vector.extract_strided_slice %1 {offsets = [0, 4, 0], sizes = [4, 1, 256], strides = [1, 1, 1]} : vector<4x8x256xf32> to vector<4x1x256xf32>
    %53 = vector.shape_cast %52 : vector<4x1x256xf32> to vector<4x256xf32>
    %54 = vector.extract_strided_slice %1 {offsets = [0, 5, 0], sizes = [4, 1, 256], strides = [1, 1, 1]} : vector<4x8x256xf32> to vector<4x1x256xf32>
    %55 = vector.shape_cast %54 : vector<4x1x256xf32> to vector<4x256xf32>
    %56 = tpu.concatenate %51, %53, %55 in 0 : vector<4x256xf32>, vector<4x256xf32>, vector<4x256xf32> -> vector<12x256xf32>
    %cst_15 = arith.constant dense<0.000000e+00> : vector<4x256xf32>
    %57 = tpu.matmul %2, %56, %cst_15 {dimension_numbers = #tpu.dot_dimension_numbers<[1], [0], [0], [1], [0, 0, 1, 1], [], []>} : vector<4x12xf32>, vector<12x256xf32>, vector<4x256xf32> -> vector<4x256xf32>
    %cst_16 = arith.constant dense<0.000000e+00> : vector<4xf32>
    %58 = vector.multi_reduction <add>, %57, %cst_16 [1] : vector<4x256xf32> to vector<4xf32>
    %59 = vector.shape_cast %58 : vector<4xf32> to vector<4x1xf32>
    %60 = arith.addf %45, %59 : vector<4x1xf32>
    %61 = arith.mulf %57, %57 : vector<4x256xf32>
    %cst_17 = arith.constant dense<0.000000e+00> : vector<4xf32>
    %62 = vector.multi_reduction <add>, %61, %cst_17 [1] : vector<4x256xf32> to vector<4xf32>
    %63 = vector.shape_cast %62 : vector<4xf32> to vector<4x1xf32>
    %64 = arith.addf %49, %63 : vector<4x1xf32>
    %65 = vector.extract_strided_slice %1 {offsets = [0, 4, 0], sizes = [4, 1, 256], strides = [1, 1, 1]} : vector<4x8x256xf32> to vector<4x1x256xf32>
    %66 = vector.shape_cast %65 : vector<4x1x256xf32> to vector<4x256xf32>
    %67 = vector.extract_strided_slice %1 {offsets = [0, 5, 0], sizes = [4, 1, 256], strides = [1, 1, 1]} : vector<4x8x256xf32> to vector<4x1x256xf32>
    %68 = vector.shape_cast %67 : vector<4x1x256xf32> to vector<4x256xf32>
    %69 = vector.extract_strided_slice %1 {offsets = [0, 6, 0], sizes = [4, 1, 256], strides = [1, 1, 1]} : vector<4x8x256xf32> to vector<4x1x256xf32>
    %70 = vector.shape_cast %69 : vector<4x1x256xf32> to vector<4x256xf32>
    %71 = tpu.concatenate %66, %68, %70 in 0 : vector<4x256xf32>, vector<4x256xf32>, vector<4x256xf32> -> vector<12x256xf32>
    %cst_18 = arith.constant dense<0.000000e+00> : vector<4x256xf32>
    %72 = tpu.matmul %2, %71, %cst_18 {dimension_numbers = #tpu.dot_dimension_numbers<[1], [0], [0], [1], [0, 0, 1, 1], [], []>} : vector<4x12xf32>, vector<12x256xf32>, vector<4x256xf32> -> vector<4x256xf32>
    %cst_19 = arith.constant dense<0.000000e+00> : vector<4xf32>
    %73 = vector.multi_reduction <add>, %72, %cst_19 [1] : vector<4x256xf32> to vector<4xf32>
    %74 = vector.shape_cast %73 : vector<4xf32> to vector<4x1xf32>
    %75 = arith.addf %60, %74 : vector<4x1xf32>
    %76 = arith.mulf %72, %72 : vector<4x256xf32>
    %cst_20 = arith.constant dense<0.000000e+00> : vector<4xf32>
    %77 = vector.multi_reduction <add>, %76, %cst_20 [1] : vector<4x256xf32> to vector<4xf32>
    %78 = vector.shape_cast %77 : vector<4xf32> to vector<4x1xf32>
    %79 = arith.addf %64, %78 : vector<4x1xf32>
    %80 = vector.extract_strided_slice %1 {offsets = [0, 5, 0], sizes = [4, 1, 256], strides = [1, 1, 1]} : vector<4x8x256xf32> to vector<4x1x256xf32>
    %81 = vector.shape_cast %80 : vector<4x1x256xf32> to vector<4x256xf32>
    %82 = vector.extract_strided_slice %1 {offsets = [0, 6, 0], sizes = [4, 1, 256], strides = [1, 1, 1]} : vector<4x8x256xf32> to vector<4x1x256xf32>
    %83 = vector.shape_cast %82 : vector<4x1x256xf32> to vector<4x256xf32>
    %84 = vector.extract_strided_slice %1 {offsets = [0, 7, 0], sizes = [4, 1, 256], strides = [1, 1, 1]} : vector<4x8x256xf32> to vector<4x1x256xf32>
    %85 = vector.shape_cast %84 : vector<4x1x256xf32> to vector<4x256xf32>
    %86 = tpu.concatenate %81, %83, %85 in 0 : vector<4x256xf32>, vector<4x256xf32>, vector<4x256xf32> -> vector<12x256xf32>
    %cst_21 = arith.constant dense<0.000000e+00> : vector<4x256xf32>
    %87 = tpu.matmul %2, %86, %cst_21 {dimension_numbers = #tpu.dot_dimension_numbers<[1], [0], [0], [1], [0, 0, 1, 1], [], []>} : vector<4x12xf32>, vector<12x256xf32>, vector<4x256xf32> -> vector<4x256xf32>
    %cst_22 = arith.constant dense<0.000000e+00> : vector<4xf32>
    %88 = vector.multi_reduction <add>, %87, %cst_22 [1] : vector<4x256xf32> to vector<4xf32>
    %89 = vector.shape_cast %88 : vector<4xf32> to vector<4x1xf32>
    %90 = arith.addf %75, %89 : vector<4x1xf32>
    %91 = arith.mulf %87, %87 : vector<4x256xf32>
    %cst_23 = arith.constant dense<0.000000e+00> : vector<4xf32>
    %92 = vector.multi_reduction <add>, %91, %cst_23 [1] : vector<4x256xf32> to vector<4xf32>
    %93 = vector.shape_cast %92 : vector<4xf32> to vector<4x1xf32>
    %94 = arith.addf %79, %93 : vector<4x1xf32>
    %c0_24 = arith.constant 0 : index
    %c0_25 = arith.constant 0 : index
    %95 = vector.load %arg3[%c0_24, %c0_25] : memref<4x8xf32, #tpu.memory_space<vmem>>, vector<4x8xf32>
    %cst_26 = arith.constant 0.000000e+00 : f32
    %96 = vector.broadcast %cst_26 : f32 to vector<4x1xf32>
    %cst_27 = arith.constant 0.000000e+00 : f32
    %97 = vector.broadcast %cst_27 : f32 to vector<4x1xf32>
    %98 = vector.extract_strided_slice %1 {offsets = [0, 5, 0], sizes = [4, 1, 256], strides = [1, 1, 1]} : vector<4x8x256xf32> to vector<4x1x256xf32>
    %99 = vector.shape_cast %98 : vector<4x1x256xf32> to vector<4x256xf32>
    %100 = vector.extract_strided_slice %1 {offsets = [0, 6, 0], sizes = [4, 1, 256], strides = [1, 1, 1]} : vector<4x8x256xf32> to vector<4x1x256xf32>
    %101 = vector.shape_cast %100 : vector<4x1x256xf32> to vector<4x256xf32>
    %102 = tpu.concatenate %99, %101 in 0 : vector<4x256xf32>, vector<4x256xf32> -> vector<8x256xf32>
    %cst_28 = arith.constant dense<0.000000e+00> : vector<4x256xf32>
    %103 = tpu.matmul %95, %102, %cst_28 {dimension_numbers = #tpu.dot_dimension_numbers<[1], [0], [0], [1], [0, 0, 1, 1], [], []>} : vector<4x8xf32>, vector<8x256xf32>, vector<4x256xf32> -> vector<4x256xf32>
    %cst_29 = arith.constant dense<0.000000e+00> : vector<4xf32>
    %104 = vector.multi_reduction <add>, %103, %cst_29 [1] : vector<4x256xf32> to vector<4xf32>
    %105 = vector.shape_cast %104 : vector<4xf32> to vector<4x1xf32>
    %106 = arith.addf %96, %105 : vector<4x1xf32>
    %107 = arith.mulf %103, %103 : vector<4x256xf32>
    %cst_30 = arith.constant dense<0.000000e+00> : vector<4xf32>
    %108 = vector.multi_reduction <add>, %107, %cst_30 [1] : vector<4x256xf32> to vector<4xf32>
    %109 = vector.shape_cast %108 : vector<4xf32> to vector<4x1xf32>
    %110 = arith.addf %97, %109 : vector<4x1xf32>
    %111 = vector.extract_strided_slice %1 {offsets = [0, 6, 0], sizes = [4, 1, 256], strides = [1, 1, 1]} : vector<4x8x256xf32> to vector<4x1x256xf32>
    %112 = vector.shape_cast %111 : vector<4x1x256xf32> to vector<4x256xf32>
    %113 = vector.extract_strided_slice %1 {offsets = [0, 7, 0], sizes = [4, 1, 256], strides = [1, 1, 1]} : vector<4x8x256xf32> to vector<4x1x256xf32>
    %114 = vector.shape_cast %113 : vector<4x1x256xf32> to vector<4x256xf32>
    %115 = tpu.concatenate %112, %114 in 0 : vector<4x256xf32>, vector<4x256xf32> -> vector<8x256xf32>
    %cst_31 = arith.constant dense<0.000000e+00> : vector<4x256xf32>
    %116 = tpu.matmul %95, %115, %cst_31 {dimension_numbers = #tpu.dot_dimension_numbers<[1], [0], [0], [1], [0, 0, 1, 1], [], []>} : vector<4x8xf32>, vector<8x256xf32>, vector<4x256xf32> -> vector<4x256xf32>
    %cst_32 = arith.constant dense<0.000000e+00> : vector<4xf32>
    %117 = vector.multi_reduction <add>, %116, %cst_32 [1] : vector<4x256xf32> to vector<4xf32>
    %118 = vector.shape_cast %117 : vector<4xf32> to vector<4x1xf32>
    %119 = arith.addf %106, %118 : vector<4x1xf32>
    %120 = arith.mulf %116, %116 : vector<4x256xf32>
    %cst_33 = arith.constant dense<0.000000e+00> : vector<4xf32>
    %121 = vector.multi_reduction <add>, %120, %cst_33 [1] : vector<4x256xf32> to vector<4xf32>
    %122 = vector.shape_cast %121 : vector<4xf32> to vector<4x1xf32>
    %123 = arith.addf %110, %122 : vector<4x1xf32>
    %124 = tpu.concatenate %90, %94, %119, %123 in 1 : vector<4x1xf32>, vector<4x1xf32>, vector<4x1xf32>, vector<4x1xf32> -> vector<4x4xf32>
    %c0_34 = arith.constant 0 : index
    %c0_35 = arith.constant 0 : index
    %c0_36 = arith.constant 0 : index
    %125 = vector.load %arg4[%c0_34, %c0_35, %c0_36] : memref<1x4x4xf32, #tpu.memory_space<vmem>>, vector<1x4x4xf32>
    %126 = vector.shape_cast %125 : vector<1x4x4xf32> to vector<4x4xf32>
    %127 = vector.shape_cast %124 : vector<4x4xf32> to vector<1x4x4xf32>
    tpu.vector_store %arg4[%c0_34, %c0_35, %c0_36], %127 {strides = array<i32>} : memref<1x4x4xf32, #tpu.memory_space<vmem>>, vector<1x4x4xf32>,
    return
  }
  func.func @transform_0(%arg0: i32) -> (i32, i32, i32, i32) {
    %c0_i32 = arith.constant 0 : i32
    %c0_i32_0 = arith.constant 0 : i32
    %c0_i32_1 = arith.constant 0 : i32
    %c0_i32_2 = arith.constant 0 : i32
    return %arg0, %c0_i32, %c0_i32_0, %c0_i32_1 : i32, i32, i32, i32
  }
  func.func @transform_1(%arg0: i32) -> (i32, i32) {
    %c0_i32 = arith.constant 0 : i32
    %c0_i32_0 = arith.constant 0 : i32
    %c0_i32_1 = arith.constant 0 : i32
    return %c0_i32, %c0_i32_0 : i32, i32
  }
  func.func @transform_2(%arg0: i32) -> (i32, i32) {
    %c0_i32 = arith.constant 0 : i32
    %c0_i32_0 = arith.constant 0 : i32
    %c0_i32_1 = arith.constant 0 : i32
    return %c0_i32, %c0_i32_0 : i32, i32
  }
  func.func @transform_3(%arg0: i32) -> (i32, i32, i32) {
    %c0_i32 = arith.constant 0 : i32
    %c0_i32_0 = arith.constant 0 : i32
    %c0_i32_1 = arith.constant 0 : i32
    return %arg0, %c0_i32, %c0_i32_0 : i32, i32, i32
  }
}

module attributes {stable_mosaic.version = 11 : i64} {
  func.func @rnet_apply_kernel(%arg0: i32, %arg1: memref<1x4x8x256xf32, #tpu.memory_space<vmem>>, %arg2: memref<4x12xf32, #tpu.memory_space<vmem>>, %arg3: memref<4x8xf32, #tpu.memory_space<vmem>>, %arg4: memref<4x2xf32, #tpu.memory_space<vmem>>, %arg5: memref<4x2xf32, #tpu.memory_space<vmem>>, %arg6: memref<1x4x8x256xf32, #tpu.memory_space<vmem>>) attributes {dimension_semantics = [#tpu.dimension_semantics<parallel>], iteration_bounds = array<i64: 2>, scalar_prefetch = 0 : i64, scratch_operands = 0 : i64, tpu.core_type = #tpu.core_type<tc>, window_params = [{transform_indices = @transform_0, window_bounds = array<i64: 1, 4, 8, 256>}, {pipeline_mode = #tpu.pipeline_mode<synchronous>, transform_indices = @transform_1, window_bounds = array<i64: 4, 12>}, {pipeline_mode = #tpu.pipeline_mode<synchronous>, transform_indices = @transform_2, window_bounds = array<i64: 4, 8>}, {pipeline_mode = #tpu.pipeline_mode<synchronous>, transform_indices = @transform_3, window_bounds = array<i64: 4, 2>}, {pipeline_mode = #tpu.pipeline_mode<synchronous>, transform_indices = @transform_4, window_bounds = array<i64: 4, 2>}, {transform_indices = @transform_5, window_bounds = array<i64: 1, 4, 8, 256>}]} {
    %c0 = arith.constant 0 : index
    %c0_0 = arith.constant 0 : index
    %c0_1 = arith.constant 0 : index
    %c0_2 = arith.constant 0 : index
    %0 = vector.load %arg1[%c0, %c0_0, %c0_1, %c0_2] : memref<1x4x8x256xf32, #tpu.memory_space<vmem>>, vector<1x4x8x256xf32>
    %1 = vector.shape_cast %0 : vector<1x4x8x256xf32> to vector<4x8x256xf32>
    %c0_3 = arith.constant 0 : index
    %c0_4 = arith.constant 0 : index
    %2 = vector.load %arg2[%c0_3, %c0_4] : memref<4x12xf32, #tpu.memory_space<vmem>>, vector<4x12xf32>
    %c0_5 = arith.constant 0 : index
    %c0_6 = arith.constant 0 : index
    %3 = vector.load %arg4[%c0_5, %c0_6] : memref<4x2xf32, #tpu.memory_space<vmem>>, vector<4x1xf32>
    %c0_7 = arith.constant 0 : index
    %c1 = arith.constant 1 : index
    %4 = vector.load %arg4[%c0_7, %c1] : memref<4x2xf32, #tpu.memory_space<vmem>>, vector<4x1xf32>
    %5 = vector.extract_strided_slice %1 {offsets = [0, 0, 0], sizes = [4, 1, 256], strides = [1, 1, 1]} : vector<4x8x256xf32> to vector<4x1x256xf32>
    %6 = vector.shape_cast %5 : vector<4x1x256xf32> to vector<4x256xf32>
    %7 = vector.extract_strided_slice %1 {offsets = [0, 1, 0], sizes = [4, 1, 256], strides = [1, 1, 1]} : vector<4x8x256xf32> to vector<4x1x256xf32>
    %8 = vector.shape_cast %7 : vector<4x1x256xf32> to vector<4x256xf32>
    %9 = vector.extract_strided_slice %1 {offsets = [0, 2, 0], sizes = [4, 1, 256], strides = [1, 1, 1]} : vector<4x8x256xf32> to vector<4x1x256xf32>
    %10 = vector.shape_cast %9 : vector<4x1x256xf32> to vector<4x256xf32>
    %11 = tpu.concatenate %6, %8, %10 in 0 : vector<4x256xf32>, vector<4x256xf32>, vector<4x256xf32> -> vector<12x256xf32>
    %cst = arith.constant dense<0.000000e+00> : vector<4x256xf32>
    %12 = tpu.matmul %2, %11, %cst {dimension_numbers = #tpu.dot_dimension_numbers<[1], [0], [0], [1], [0, 0, 1, 1], [], []>} : vector<4x12xf32>, vector<12x256xf32>, vector<4x256xf32> -> vector<4x256xf32>
    %13 = vector.broadcast %3 : vector<4x1xf32> to vector<4x256xf32>
    %14 = arith.mulf %12, %13 : vector<4x256xf32>
    %15 = vector.broadcast %4 : vector<4x1xf32> to vector<4x256xf32>
    %16 = arith.addf %14, %15 : vector<4x256xf32>
    %cst_8 = arith.constant 0.000000e+00 : f32
    %17 = vector.broadcast %cst_8 : f32 to vector<4x256xf32>
    %18 = arith.cmpf ogt, %16, %17 : vector<4x256xf32>
    %cst_9 = arith.constant 0.00999999977 : f32
    %19 = vector.broadcast %cst_9 : f32 to vector<4x256xf32>
    %20 = arith.mulf %19, %16 : vector<4x256xf32>
    %21 = arith.select %18, %16, %20 : vector<4x256xi1>, vector<4x256xf32>
    %22 = vector.extract_strided_slice %1 {offsets = [0, 1, 0], sizes = [4, 1, 256], strides = [1, 1, 1]} : vector<4x8x256xf32> to vector<4x1x256xf32>
    %23 = vector.shape_cast %22 : vector<4x1x256xf32> to vector<4x256xf32>
    %24 = vector.extract_strided_slice %1 {offsets = [0, 2, 0], sizes = [4, 1, 256], strides = [1, 1, 1]} : vector<4x8x256xf32> to vector<4x1x256xf32>
    %25 = vector.shape_cast %24 : vector<4x1x256xf32> to vector<4x256xf32>
    %26 = vector.extract_strided_slice %1 {offsets = [0, 3, 0], sizes = [4, 1, 256], strides = [1, 1, 1]} : vector<4x8x256xf32> to vector<4x1x256xf32>
    %27 = vector.shape_cast %26 : vector<4x1x256xf32> to vector<4x256xf32>
    %28 = tpu.concatenate %23, %25, %27 in 0 : vector<4x256xf32>, vector<4x256xf32>, vector<4x256xf32> -> vector<12x256xf32>
    %cst_10 = arith.constant dense<0.000000e+00> : vector<4x256xf32>
    %29 = tpu.matmul %2, %28, %cst_10 {dimension_numbers = #tpu.dot_dimension_numbers<[1], [0], [0], [1], [0, 0, 1, 1], [], []>} : vector<4x12xf32>, vector<12x256xf32>, vector<4x256xf32> -> vector<4x256xf32>
    %30 = vector.broadcast %3 : vector<4x1xf32> to vector<4x256xf32>
    %31 = arith.mulf %29, %30 : vector<4x256xf32>
    %32 = vector.broadcast %4 : vector<4x1xf32> to vector<4x256xf32>
    %33 = arith.addf %31, %32 : vector<4x256xf32>
    %cst_11 = arith.constant 0.000000e+00 : f32
    %34 = vector.broadcast %cst_11 : f32 to vector<4x256xf32>
    %35 = arith.cmpf ogt, %33, %34 : vector<4x256xf32>
    %cst_12 = arith.constant 0.00999999977 : f32
    %36 = vector.broadcast %cst_12 : f32 to vector<4x256xf32>
    %37 = arith.mulf %36, %33 : vector<4x256xf32>
    %38 = arith.select %35, %33, %37 : vector<4x256xi1>, vector<4x256xf32>
    %39 = vector.extract_strided_slice %1 {offsets = [0, 2, 0], sizes = [4, 1, 256], strides = [1, 1, 1]} : vector<4x8x256xf32> to vector<4x1x256xf32>
    %40 = vector.shape_cast %39 : vector<4x1x256xf32> to vector<4x256xf32>
    %41 = vector.extract_strided_slice %1 {offsets = [0, 3, 0], sizes = [4, 1, 256], strides = [1, 1, 1]} : vector<4x8x256xf32> to vector<4x1x256xf32>
    %42 = vector.shape_cast %41 : vector<4x1x256xf32> to vector<4x256xf32>
    %43 = vector.extract_strided_slice %1 {offsets = [0, 4, 0], sizes = [4, 1, 256], strides = [1, 1, 1]} : vector<4x8x256xf32> to vector<4x1x256xf32>
    %44 = vector.shape_cast %43 : vector<4x1x256xf32> to vector<4x256xf32>
    %45 = tpu.concatenate %40, %42, %44 in 0 : vector<4x256xf32>, vector<4x256xf32>, vector<4x256xf32> -> vector<12x256xf32>
    %cst_13 = arith.constant dense<0.000000e+00> : vector<4x256xf32>
    %46 = tpu.matmul %2, %45, %cst_13 {dimension_numbers = #tpu.dot_dimension_numbers<[1], [0], [0], [1], [0, 0, 1, 1], [], []>} : vector<4x12xf32>, vector<12x256xf32>, vector<4x256xf32> -> vector<4x256xf32>
    %47 = vector.broadcast %3 : vector<4x1xf32> to vector<4x256xf32>
    %48 = arith.mulf %46, %47 : vector<4x256xf32>
    %49 = vector.broadcast %4 : vector<4x1xf32> to vector<4x256xf32>
    %50 = arith.addf %48, %49 : vector<4x256xf32>
    %cst_14 = arith.constant 0.000000e+00 : f32
    %51 = vector.broadcast %cst_14 : f32 to vector<4x256xf32>
    %52 = arith.cmpf ogt, %50, %51 : vector<4x256xf32>
    %cst_15 = arith.constant 0.00999999977 : f32
    %53 = vector.broadcast %cst_15 : f32 to vector<4x256xf32>
    %54 = arith.mulf %53, %50 : vector<4x256xf32>
    %55 = arith.select %52, %50, %54 : vector<4x256xi1>, vector<4x256xf32>
    %56 = vector.extract_strided_slice %1 {offsets = [0, 3, 0], sizes = [4, 1, 256], strides = [1, 1, 1]} : vector<4x8x256xf32> to vector<4x1x256xf32>
    %57 = vector.shape_cast %56 : vector<4x1x256xf32> to vector<4x256xf32>
    %58 = vector.extract_strided_slice %1 {offsets = [0, 4, 0], sizes = [4, 1, 256], strides = [1, 1, 1]} : vector<4x8x256xf32> to vector<4x1x256xf32>
    %59 = vector.shape_cast %58 : vector<4x1x256xf32> to vector<4x256xf32>
    %60 = vector.extract_strided_slice %1 {offsets = [0, 5, 0], sizes = [4, 1, 256], strides = [1, 1, 1]} : vector<4x8x256xf32> to vector<4x1x256xf32>
    %61 = vector.shape_cast %60 : vector<4x1x256xf32> to vector<4x256xf32>
    %62 = tpu.concatenate %57, %59, %61 in 0 : vector<4x256xf32>, vector<4x256xf32>, vector<4x256xf32> -> vector<12x256xf32>
    %cst_16 = arith.constant dense<0.000000e+00> : vector<4x256xf32>
    %63 = tpu.matmul %2, %62, %cst_16 {dimension_numbers = #tpu.dot_dimension_numbers<[1], [0], [0], [1], [0, 0, 1, 1], [], []>} : vector<4x12xf32>, vector<12x256xf32>, vector<4x256xf32> -> vector<4x256xf32>
    %64 = vector.broadcast %3 : vector<4x1xf32> to vector<4x256xf32>
    %65 = arith.mulf %63, %64 : vector<4x256xf32>
    %66 = vector.broadcast %4 : vector<4x1xf32> to vector<4x256xf32>
    %67 = arith.addf %65, %66 : vector<4x256xf32>
    %cst_17 = arith.constant 0.000000e+00 : f32
    %68 = vector.broadcast %cst_17 : f32 to vector<4x256xf32>
    %69 = arith.cmpf ogt, %67, %68 : vector<4x256xf32>
    %cst_18 = arith.constant 0.00999999977 : f32
    %70 = vector.broadcast %cst_18 : f32 to vector<4x256xf32>
    %71 = arith.mulf %70, %67 : vector<4x256xf32>
    %72 = arith.select %69, %67, %71 : vector<4x256xi1>, vector<4x256xf32>
    %73 = vector.extract_strided_slice %1 {offsets = [0, 4, 0], sizes = [4, 1, 256], strides = [1, 1, 1]} : vector<4x8x256xf32> to vector<4x1x256xf32>
    %74 = vector.shape_cast %73 : vector<4x1x256xf32> to vector<4x256xf32>
    %75 = vector.extract_strided_slice %1 {offsets = [0, 5, 0], sizes = [4, 1, 256], strides = [1, 1, 1]} : vector<4x8x256xf32> to vector<4x1x256xf32>
    %76 = vector.shape_cast %75 : vector<4x1x256xf32> to vector<4x256xf32>
    %77 = vector.extract_strided_slice %1 {offsets = [0, 6, 0], sizes = [4, 1, 256], strides = [1, 1, 1]} : vector<4x8x256xf32> to vector<4x1x256xf32>
    %78 = vector.shape_cast %77 : vector<4x1x256xf32> to vector<4x256xf32>
    %79 = tpu.concatenate %74, %76, %78 in 0 : vector<4x256xf32>, vector<4x256xf32>, vector<4x256xf32> -> vector<12x256xf32>
    %cst_19 = arith.constant dense<0.000000e+00> : vector<4x256xf32>
    %80 = tpu.matmul %2, %79, %cst_19 {dimension_numbers = #tpu.dot_dimension_numbers<[1], [0], [0], [1], [0, 0, 1, 1], [], []>} : vector<4x12xf32>, vector<12x256xf32>, vector<4x256xf32> -> vector<4x256xf32>
    %81 = vector.broadcast %3 : vector<4x1xf32> to vector<4x256xf32>
    %82 = arith.mulf %80, %81 : vector<4x256xf32>
    %83 = vector.broadcast %4 : vector<4x1xf32> to vector<4x256xf32>
    %84 = arith.addf %82, %83 : vector<4x256xf32>
    %cst_20 = arith.constant 0.000000e+00 : f32
    %85 = vector.broadcast %cst_20 : f32 to vector<4x256xf32>
    %86 = arith.cmpf ogt, %84, %85 : vector<4x256xf32>
    %cst_21 = arith.constant 0.00999999977 : f32
    %87 = vector.broadcast %cst_21 : f32 to vector<4x256xf32>
    %88 = arith.mulf %87, %84 : vector<4x256xf32>
    %89 = arith.select %86, %84, %88 : vector<4x256xi1>, vector<4x256xf32>
    %90 = vector.extract_strided_slice %1 {offsets = [0, 5, 0], sizes = [4, 1, 256], strides = [1, 1, 1]} : vector<4x8x256xf32> to vector<4x1x256xf32>
    %91 = vector.shape_cast %90 : vector<4x1x256xf32> to vector<4x256xf32>
    %92 = vector.extract_strided_slice %1 {offsets = [0, 6, 0], sizes = [4, 1, 256], strides = [1, 1, 1]} : vector<4x8x256xf32> to vector<4x1x256xf32>
    %93 = vector.shape_cast %92 : vector<4x1x256xf32> to vector<4x256xf32>
    %94 = vector.extract_strided_slice %1 {offsets = [0, 7, 0], sizes = [4, 1, 256], strides = [1, 1, 1]} : vector<4x8x256xf32> to vector<4x1x256xf32>
    %95 = vector.shape_cast %94 : vector<4x1x256xf32> to vector<4x256xf32>
    %96 = tpu.concatenate %91, %93, %95 in 0 : vector<4x256xf32>, vector<4x256xf32>, vector<4x256xf32> -> vector<12x256xf32>
    %cst_22 = arith.constant dense<0.000000e+00> : vector<4x256xf32>
    %97 = tpu.matmul %2, %96, %cst_22 {dimension_numbers = #tpu.dot_dimension_numbers<[1], [0], [0], [1], [0, 0, 1, 1], [], []>} : vector<4x12xf32>, vector<12x256xf32>, vector<4x256xf32> -> vector<4x256xf32>
    %98 = vector.broadcast %3 : vector<4x1xf32> to vector<4x256xf32>
    %99 = arith.mulf %97, %98 : vector<4x256xf32>
    %100 = vector.broadcast %4 : vector<4x1xf32> to vector<4x256xf32>
    %101 = arith.addf %99, %100 : vector<4x256xf32>
    %cst_23 = arith.constant 0.000000e+00 : f32
    %102 = vector.broadcast %cst_23 : f32 to vector<4x256xf32>
    %103 = arith.cmpf ogt, %101, %102 : vector<4x256xf32>
    %cst_24 = arith.constant 0.00999999977 : f32
    %104 = vector.broadcast %cst_24 : f32 to vector<4x256xf32>
    %105 = arith.mulf %104, %101 : vector<4x256xf32>
    %106 = arith.select %103, %101, %105 : vector<4x256xi1>, vector<4x256xf32>
    %c0_25 = arith.constant 0 : index
    %c0_26 = arith.constant 0 : index
    %107 = vector.load %arg3[%c0_25, %c0_26] : memref<4x8xf32, #tpu.memory_space<vmem>>, vector<4x8xf32>
    %c0_27 = arith.constant 0 : index
    %c0_28 = arith.constant 0 : index
    %108 = vector.load %arg5[%c0_27, %c0_28] : memref<4x2xf32, #tpu.memory_space<vmem>>, vector<4x1xf32>
    %c0_29 = arith.constant 0 : index
    %c1_30 = arith.constant 1 : index
    %109 = vector.load %arg5[%c0_29, %c1_30] : memref<4x2xf32, #tpu.memory_space<vmem>>, vector<4x1xf32>
    %110 = vector.extract_strided_slice %1 {offsets = [0, 5, 0], sizes = [4, 1, 256], strides = [1, 1, 1]} : vector<4x8x256xf32> to vector<4x1x256xf32>
    %111 = vector.shape_cast %110 : vector<4x1x256xf32> to vector<4x256xf32>
    %112 = vector.extract_strided_slice %1 {offsets = [0, 6, 0], sizes = [4, 1, 256], strides = [1, 1, 1]} : vector<4x8x256xf32> to vector<4x1x256xf32>
    %113 = vector.shape_cast %112 : vector<4x1x256xf32> to vector<4x256xf32>
    %114 = tpu.concatenate %111, %113 in 0 : vector<4x256xf32>, vector<4x256xf32> -> vector<8x256xf32>
    %cst_31 = arith.constant dense<0.000000e+00> : vector<4x256xf32>
    %115 = tpu.matmul %107, %114, %cst_31 {dimension_numbers = #tpu.dot_dimension_numbers<[1], [0], [0], [1], [0, 0, 1, 1], [], []>} : vector<4x8xf32>, vector<8x256xf32>, vector<4x256xf32> -> vector<4x256xf32>
    %116 = vector.broadcast %108 : vector<4x1xf32> to vector<4x256xf32>
    %117 = arith.mulf %115, %116 : vector<4x256xf32>
    %118 = vector.broadcast %109 : vector<4x1xf32> to vector<4x256xf32>
    %119 = arith.addf %117, %118 : vector<4x256xf32>
    %cst_32 = arith.constant 0.000000e+00 : f32
    %120 = vector.broadcast %cst_32 : f32 to vector<4x256xf32>
    %121 = arith.cmpf ogt, %119, %120 : vector<4x256xf32>
    %cst_33 = arith.constant 0.00999999977 : f32
    %122 = vector.broadcast %cst_33 : f32 to vector<4x256xf32>
    %123 = arith.mulf %122, %119 : vector<4x256xf32>
    %124 = arith.select %121, %119, %123 : vector<4x256xi1>, vector<4x256xf32>
    %125 = vector.extract_strided_slice %1 {offsets = [0, 6, 0], sizes = [4, 1, 256], strides = [1, 1, 1]} : vector<4x8x256xf32> to vector<4x1x256xf32>
    %126 = vector.shape_cast %125 : vector<4x1x256xf32> to vector<4x256xf32>
    %127 = vector.extract_strided_slice %1 {offsets = [0, 7, 0], sizes = [4, 1, 256], strides = [1, 1, 1]} : vector<4x8x256xf32> to vector<4x1x256xf32>
    %128 = vector.shape_cast %127 : vector<4x1x256xf32> to vector<4x256xf32>
    %129 = tpu.concatenate %126, %128 in 0 : vector<4x256xf32>, vector<4x256xf32> -> vector<8x256xf32>
    %cst_34 = arith.constant dense<0.000000e+00> : vector<4x256xf32>
    %130 = tpu.matmul %107, %129, %cst_34 {dimension_numbers = #tpu.dot_dimension_numbers<[1], [0], [0], [1], [0, 0, 1, 1], [], []>} : vector<4x8xf32>, vector<8x256xf32>, vector<4x256xf32> -> vector<4x256xf32>
    %131 = vector.broadcast %108 : vector<4x1xf32> to vector<4x256xf32>
    %132 = arith.mulf %130, %131 : vector<4x256xf32>
    %133 = vector.broadcast %109 : vector<4x1xf32> to vector<4x256xf32>
    %134 = arith.addf %132, %133 : vector<4x256xf32>
    %cst_35 = arith.constant 0.000000e+00 : f32
    %135 = vector.broadcast %cst_35 : f32 to vector<4x256xf32>
    %136 = arith.cmpf ogt, %134, %135 : vector<4x256xf32>
    %cst_36 = arith.constant 0.00999999977 : f32
    %137 = vector.broadcast %cst_36 : f32 to vector<4x256xf32>
    %138 = arith.mulf %137, %134 : vector<4x256xf32>
    %139 = arith.select %136, %134, %138 : vector<4x256xi1>, vector<4x256xf32>
    %140 = arith.subf %106, %124 : vector<4x256xf32>
    %141 = arith.subf %106, %139 : vector<4x256xf32>
    %142 = arith.subf %106, %139 : vector<4x256xf32>
    %143 = vector.shape_cast %21 : vector<4x256xf32> to vector<4x1x256xf32>
    %144 = vector.shape_cast %38 : vector<4x256xf32> to vector<4x1x256xf32>
    %145 = vector.shape_cast %55 : vector<4x256xf32> to vector<4x1x256xf32>
    %146 = vector.shape_cast %72 : vector<4x256xf32> to vector<4x1x256xf32>
    %147 = vector.shape_cast %89 : vector<4x256xf32> to vector<4x1x256xf32>
    %148 = vector.shape_cast %140 : vector<4x256xf32> to vector<4x1x256xf32>
    %149 = vector.shape_cast %141 : vector<4x256xf32> to vector<4x1x256xf32>
    %150 = vector.shape_cast %142 : vector<4x256xf32> to vector<4x1x256xf32>
    %151 = tpu.concatenate %143, %144, %145, %146, %147, %148, %149, %150 in 1 : vector<4x1x256xf32>, vector<4x1x256xf32>, vector<4x1x256xf32>, vector<4x1x256xf32>, vector<4x1x256xf32>, vector<4x1x256xf32>, vector<4x1x256xf32>, vector<4x1x256xf32> -> vector<4x8x256xf32>
    %c0_37 = arith.constant 0 : index
    %c0_38 = arith.constant 0 : index
    %c0_39 = arith.constant 0 : index
    %c0_40 = arith.constant 0 : index
    %152 = vector.load %arg6[%c0_37, %c0_38, %c0_39, %c0_40] : memref<1x4x8x256xf32, #tpu.memory_space<vmem>>, vector<1x4x8x256xf32>
    %153 = vector.shape_cast %152 : vector<1x4x8x256xf32> to vector<4x8x256xf32>
    %154 = vector.shape_cast %151 : vector<4x8x256xf32> to vector<1x4x8x256xf32>
    tpu.vector_store %arg6[%c0_37, %c0_38, %c0_39, %c0_40], %154 {strides = array<i32>} : memref<1x4x8x256xf32, #tpu.memory_space<vmem>>, vector<1x4x8x256xf32>,
    return
  }
  func.func @transform_0(%arg0: i32) -> (i32, i32, i32, i32) {
    %c0_i32 = arith.constant 0 : i32
    %c0_i32_0 = arith.constant 0 : i32
    %c0_i32_1 = arith.constant 0 : i32
    %c0_i32_2 = arith.constant 0 : i32
    return %arg0, %c0_i32, %c0_i32_0, %c0_i32_1 : i32, i32, i32, i32
  }
  func.func @transform_1(%arg0: i32) -> (i32, i32) {
    %c0_i32 = arith.constant 0 : i32
    %c0_i32_0 = arith.constant 0 : i32
    %c0_i32_1 = arith.constant 0 : i32
    return %c0_i32, %c0_i32_0 : i32, i32
  }
  func.func @transform_2(%arg0: i32) -> (i32, i32) {
    %c0_i32 = arith.constant 0 : i32
    %c0_i32_0 = arith.constant 0 : i32
    %c0_i32_1 = arith.constant 0 : i32
    return %c0_i32, %c0_i32_0 : i32, i32
  }
  func.func @transform_3(%arg0: i32) -> (i32, i32) {
    %c0_i32 = arith.constant 0 : i32
    %c0_i32_0 = arith.constant 0 : i32
    %c0_i32_1 = arith.constant 0 : i32
    return %c0_i32, %c0_i32_0 : i32, i32
  }
  func.func @transform_4(%arg0: i32) -> (i32, i32) {
    %c0_i32 = arith.constant 0 : i32
    %c0_i32_0 = arith.constant 0 : i32
    %c0_i32_1 = arith.constant 0 : i32
    return %c0_i32, %c0_i32_0 : i32, i32
  }
  func.func @transform_5(%arg0: i32) -> (i32, i32, i32, i32) {
    %c0_i32 = arith.constant 0 : i32
    %c0_i32_0 = arith.constant 0 : i32
    %c0_i32_1 = arith.constant 0 : i32
    %c0_i32_2 = arith.constant 0 : i32
    return %arg0, %c0_i32, %c0_i32_0, %c0_i32_1 : i32, i32, i32, i32
  }
}

</mosaic_0001>

<llo_original>
// kernel: rnet_forward.2
$region0: #{rnet_forward.2}
  #allocation0 [shape = 'u32[]', space=smem, size = 0x4, offset = 0x4, fixed_abs, tag = 'smem constant byte address 0x4 - core index']
  #allocation1 [shape = 'u32[72,128]{1,0:T(1,128)}', space=vmem, size = 0x9000, scoped, tag = 'internal scratch']
  %s0 = inlined_call_operand.vmem [shape: f32[2,4,8,256], index: 0, kind: input, shape index: {}]
  %s1 = inlined_call_operand.vmem [shape: f32[4,12], index: 1, kind: input, shape index: {}]
  %s2 = inlined_call_operand.vmem [shape: f32[4,8], index: 2, kind: input, shape index: {}]
  %s3 = inlined_call_operand.vmem [shape: f32[2,4,4], index: 3, kind: output, shape index: {}]
  %s4 = sld [smem:[#allocation0]]
  $region45: #{rnet_forward.2} parent=0
    _
  %s6 = ssub.s32 1, %s4
  %s7 = scalar_select 0, %s6, %s4
  loop: start=0, step=1, limit=4
  $region2: #{rnet_forward.2} parent=0 // loop_pre_header
    _
  $region3: #{rnet_forward.2} parent=0 // loop_header
    %s9 = sphi 0, %s13
    %p10 = scmp.ge.s32.totalorder %s9, 4
    %s19 = sphi 0, %s21
    %s22 = sphi 0, %s19
    %s23 = sphi 0, %s22
    %s39 = sphi 0, %s23
    %s43 = sphi 0, %s43
    %s45 = sphi 0, %s43
    %s46 = sphi 0, %s45
    %s60 = sphi 0, %s46
    %s64 = sphi 0, %s64
    %s66 = sphi 0, %s64
    %s67 = sphi 0, %s66
    %s81 = sphi 0, %s67
    %s87 = sphi 0, %s89
    %s90 = sphi 0, %s87
    %s91 = sphi 0, %s90
    %s107 = sphi 0, %s91
  $region4: #{rnet_forward.2} parent=0 // loop_header_branch
    %12 = sbr.rel (%p10) target = $region8
  $region5: #{rnet_forward.2} parent=0 // loop_body
    %s14 = ssub.s32 %s9, 1
    %s15 = ssub.s32 %s9, 2
    %s16 = sadd.s32 %s9, 1
    %s17 = ssub.s32 %s9, %s16
    %p18 = scmp.eq.s32.totalorder %s17, 0
    %s20 = sadd.s32 %s19, 1
    %s21 = scalar_select %p18, %s19, %s20
    %p24 = pneg %p18
    %p25 = scmp.eq.s32.totalorder %s9, 1
    %p26 = por %p24, %p25
    %p27 = scmp.ne.s32.totalorder %s19, %s22
    %p28 = scmp.eq.s32.totalorder %s9, 0
    %p29 = por %p27, %p28
    %p30 = scmp.ne.s32.totalorder %s19, %s22
    %p31 = scmp.eq.s32.totalorder %s14, 1
    %p32 = por %p30, %p31
    %p33 = scmp.ne.s32.totalorder %s22, %s23
    %p34 = scmp.eq.s32.totalorder %s14, 0
    %p35 = por %p33, %p34
    %p36 = scmp.ne.s32.totalorder %s22, %s23
    %p37 = scmp.eq.s32.totalorder %s15, 1
    %p38 = por %p36, %p37
    %p40 = scmp.ne.s32.totalorder %s23, %s39
    %p41 = scmp.eq.s32.totalorder %s15, 0
    %p42 = por %p40, %p41
    %s44 = sadd.s32 %s43, 1
    %p47 = scmp.eq.s32.totalorder %s9, 1
    %p48 = scmp.ne.s32.totalorder %s43, %s45
    %p49 = scmp.eq.s32.totalorder %s9, 0
    %p50 = por %p48, %p49
    %p51 = scmp.ne.s32.totalorder %s43, %s45
    %p52 = scmp.eq.s32.totalorder %s14, 1
    %p53 = por %p51, %p52
    %p54 = scmp.ne.s32.totalorder %s45, %s46
    %p55 = scmp.eq.s32.totalorder %s14, 0
    %p56 = por %p54, %p55
    %p57 = scmp.ne.s32.totalorder %s45, %s46
    %p58 = scmp.eq.s32.totalorder %s15, 1
    %p59 = por %p57, %p58
    %p61 = scmp.ne.s32.totalorder %s46, %s60
    %p62 = scmp.eq.s32.totalorder %s15, 0
    %p63 = por %p61, %p62
    %s65 = sadd.s32 %s64, 1
    %p68 = scmp.eq.s32.totalorder %s9, 1
    %p69 = scmp.ne.s32.totalorder %s64, %s66
    %p70 = scmp.eq.s32.totalorder %s9, 0
    %p71 = por %p69, %p70
    %p72 = scmp.ne.s32.totalorder %s64, %s66
    %p73 = scmp.eq.s32.totalorder %s14, 1
    %p74 = por %p72, %p73
    %p75 = scmp.ne.s32.totalorder %s66, %s67
    %p76 = scmp.eq.s32.totalorder %s14, 0
    %p77 = por %p75, %p76
    %p78 = scmp.ne.s32.totalorder %s66, %s67
    %p79 = scmp.eq.s32.totalorder %s15, 1
    %p80 = por %p78, %p79
    %p82 = scmp.ne.s32.totalorder %s67, %s81
    %p83 = scmp.eq.s32.totalorder %s15, 0
    %p84 = por %p82, %p83
    %s85 = ssub.s32 %s9, %s16
    %p86 = scmp.eq.s32.totalorder %s85, 0
    %s88 = sadd.s32 %s87, 1
    %s89 = scalar_select %p86, %s87, %s88
    %p92 = pneg %p86
    %p93 = scmp.eq.s32.totalorder %s9, 1
    %p94 = por %p92, %p93
    %p95 = scmp.ne.s32.totalorder %s87, %s90
    %p96 = scmp.eq.s32.totalorder %s9, 0
    %p97 = por %p95, %p96
    %p98 = scmp.ne.s32.totalorder %s87, %s90
    %p99 = scmp.eq.s32.totalorder %s14, 1
    %p100 = por %p98, %p99
    %p101 = scmp.ne.s32.totalorder %s90, %s91
    %p102 = scmp.eq.s32.totalorder %s14, 0
    %p103 = por %p101, %p102
    %p104 = scmp.ne.s32.totalorder %s90, %s91
    %p105 = scmp.eq.s32.totalorder %s15, 1
    %p106 = por %p104, %p105
    %p108 = scmp.ne.s32.totalorder %s91, %s107
    %p109 = scmp.eq.s32.totalorder %s15, 0
    %p110 = por %p108, %p109
    %p111 = scmp.le.s32.totalorder 1, %s9
    %p112 = scmp.lt.s32.totalorder %s9, 3
    %p113 = pnand %p111, %p112
    %p114 = pneg %p113
    // Predicated region
    $region9: #{rnet_forward.2} parent=5 // pred_check
      _
    $region10: #{rnet_forward.2} parent=5 // pred_check_branch
      %116 = sbr.rel (%p113) target = $region12
    $region11: #{rnet_forward.2} parent=5 // pred_region
      %s117 = ssub.s32 %s9, 1
      // Predicated region
      $region13: #{rnet_forward.2} parent=11 // pred_check
        %p118 = pneg %p56
      $region14: #{rnet_forward.2} parent=11 // pred_check_branch
        %120 = sbr.rel (%p118) target = $region16
      $region15: #{rnet_forward.2} parent=11 // pred_region
        _
      $region16: #{rnet_forward.2} parent=11 // pred_fallthru
        _
      // Predicated region
      $region17: #{rnet_forward.2} parent=11 // pred_check
        %p121 = pneg %p77
      $region18: #{rnet_forward.2} parent=11 // pred_check_branch
        %123 = sbr.rel (%p121) target = $region20
      $region19: #{rnet_forward.2} parent=11 // pred_region
        _
      $region20: #{rnet_forward.2} parent=11 // pred_fallthru
        _
    $region12: #{rnet_forward.2} parent=5 // pred_fallthru
      _
    %p124 = scmp.lt.s32.totalorder %s9, 2
    // Predicated region
    $region21: #{rnet_forward.2} parent=5 // pred_check
      %p125 = pneg %p124
    $region22: #{rnet_forward.2} parent=5 // pred_check_branch
      %127 = sbr.rel (%p125) target = $region24
    $region23: #{rnet_forward.2} parent=5 // pred_region
      // Predicated region
      $region25: #{rnet_forward.2} parent=23 // pred_check
        %p128 = pneg %p29
      $region26: #{rnet_forward.2} parent=23 // pred_check_branch
        %130 = sbr.rel (%p128) target = $region28
      $region27: #{rnet_forward.2} parent=23 // pred_region
        %p131 = scmp.lt.s32.totalorder %s9, 1
        %s132 = scalar_select %p131, %s9, 1
        %s133 = smul.addr %s132, 8
        %s134 = smul.addr %s133, 8
        %s135 = scalar_lea.vmem %s0, %s134
      $region28: #{rnet_forward.2} parent=23 // pred_fallthru
        _
    $region24: #{rnet_forward.2} parent=5 // pred_fallthru
      _
    %p136 = scmp.le.s32.totalorder 1, %s9
    %p137 = scmp.lt.s32.totalorder %s9, 3
    %p138 = pnand %p136, %p137
    %p139 = pneg %p138
    // Predicated region
    $region29: #{rnet_forward.2} parent=5 // pred_check
      _
    $region30: #{rnet_forward.2} parent=5 // pred_check_branch
      %141 = sbr.rel (%p138) target = $region32
    $region31: #{rnet_forward.2} parent=5 // pred_region
      %s142 = ssub.s32 %s9, 1
      %p143 = scmp.lt.s32.totalorder %s14, 1
      %s144 = scalar_select %p143, %s14, 1
      %s145 = smul.addr %s144, 8
      %s146 = smul.addr %s145, 8
      %s147 = scalar_lea.vmem %s0, %s146
      %p148 = pneg %p35
      %p149 = pneg %p32
      %p150 = pneg %p56
      %p151 = pneg %p53
      %p152 = pneg %p77
      %p153 = pneg %p74
      %p154 = pneg %p103
      %p155 = pneg %p100
      %p156 = scmp.lt.s32.totalorder %s14, 1
      %s157 = scalar_select %p156, %s14, 1
      %s158 = smul.addr %s157, 4
      %s159 = scalar_lea.vmem %s3, %s158
      %p160 = scmp.lt.s32.totalorder %s14, 1
      %s161 = scalar_select %p160, %s14, 1
      %s162 = smul.addr %s161, 8
      %s163 = smul.addr %s162, 8
      %s164 = scalar_lea.vmem %s0, %s163
      %p165 = scmp.lt.s32.totalorder %s14, 1
      %s166 = scalar_select %p165, %s14, 1
      %s167 = smul.addr %s166, 4
      %s168 = scalar_lea.vmem %s3, %s167
      %v169 = vld [vmem:[%s164] sm:$0xff]
      %v170 = vld [vmem:[%s164 + $0x8] sm:$0xff]
      %v171 = vld [vmem:[%s164 + $0x10] sm:$0xff]
      %v172 = vld [vmem:[%s164 + $0x18] sm:$0xff]
      %v173 = vld [vmem:[%s164 + $0x20] sm:$0xff]
      %v174 = vld [vmem:[%s164 + $0x28] sm:$0xff]
      %v175 = vld [vmem:[%s164 + $0x30] sm:$0xff]
      %v176 = vld [vmem:[%s164 + $0x38] sm:$0xff]
      %v177 = vld [vmem:[%s1] sm:$0xf]
      %v186 = vrot.slane %v171, 7
      %vm187 = vcmask 1041409
      %v188 = vsel %vm187, %v186, %v169
      %v189 = vrot.slane %v173, 6
      %vm190 = vcmask 1042434
      %v191 = vsel %vm190, %v189, %v188
      %v192 = vrot.slane %v175, 5
      %vm193 = vcmask 1043459
      %v194 = vsel %vm193, %v192, %v191
      %v195 = vrot.slane %v172, 7
      %v196 = vsel %vm187, %v195, %v170
      %v197 = vrot.slane %v174, 6
      %v198 = vsel %vm190, %v197, %v196
      %v199 = vrot.slane %v176, 5
      %v200 = vsel %vm193, %v199, %v198
      %v203 = vrot.slane %v169, 5
      %v204 = vrot.slane %v171, 4
      %vm205 = vcmask 1045509
      %v206 = vsel %vm205, %v204, %v203
      %v207 = vrot.slane %v173, 3
      %vm208 = vcmask 1046534
      %v209 = vsel %vm208, %v207, %v206
      %v210 = vrot.slane %v175, 2
      %vm211 = vcmask 1047559
      %v212 = vsel %vm211, %v210, %v209
      %v213 = vrot.slane %v170, 5
      %v214 = vrot.slane %v172, 4
      %v215 = vsel %vm205, %v214, %v213
      %v216 = vrot.slane %v174, 3
      %v217 = vsel %vm208, %v216, %v215
      %v218 = vrot.slane %v176, 2
      %v219 = vsel %vm211, %v218, %v217
      %v222 = vrot.slane %v169, 2
      %v223 = vrot.slane %v171, 1
      %v224 = vsel %vm187, %v223, %v222
      %v225 = vsel %vm190, %v173, %v224
      %v226 = vrot.slane %v175, 7
      %v227 = vsel %vm193, %v226, %v225
      %v228 = vrot.slane %v170, 2
      %v229 = vrot.slane %v172, 1
      %v230 = vsel %vm187, %v229, %v228
      %v231 = vsel %vm190, %v174, %v230
      %v232 = vrot.slane %v176, 7
      %v233 = vsel %vm193, %v232, %v231
      %vm234 = vcmask 1043456
      %v235 = vsel %vm234, %v194, %v212
      %v236 = vsel %vm234, %v200, %v219
      %vm237 = vcmask 97280
      %v239 = vsel %vm237, %v177, 0
      %v241 = vsel %vm234, %v227, 0
      %v243 = vsel %vm234, %v233, 0
      %245 = vmatpush.msra.mxu0 0.0
      %246 = vmatpush.msra.mxu0 0.0
      %247 = vmatpush.msra.mxu0 0.0
      %248 = vmatpush.msra.mxu0 0.0
      %249 = vmatpush.msra.mxu0 0.0
      %250 = vmatpush.msra.mxu0 0.0
      %251 = vmatpush.msra.mxu0 0.0
      %252 = vmatpush.msra.mxu0 0.0
      %253 = vmatpush.msra.mxu0 0.0
      %254 = vmatpush.msra.mxu0 0.0
      %255 = vmatpush.msra.mxu0 0.0
      %256 = vmatpush.msra.mxu0 0.0
      %257 = vmatpush.msra.mxu0 0.0
      %258 = vmatpush.msra.mxu0 0.0
      %259 = vmatpush.msra.mxu0 %v241
      %260 = vmatpush.msra.mxu0 %v235
      %261 = vmatmul.f32.gmra.mxu0 %v239
      %v262 = vpop.f32.mrf.mxu0
      %v263 = vadd.f32 0.0, %v262
      %264 = vdwg.mxu0
      %265 = vmatpush.msra.mxu0 0.0
      %266 = vmatpush.msra.mxu0 0.0
      %267 = vmatpush.msra.mxu0 0.0
      %268 = vmatpush.msra.mxu0 0.0
      %269 = vmatpush.msra.mxu0 0.0
      %270 = vmatpush.msra.mxu0 0.0
      %271 = vmatpush.msra.mxu0 0.0
      %272 = vmatpush.msra.mxu0 0.0
      %273 = vmatpush.msra.mxu0 0.0
      %274 = vmatpush.msra.mxu0 0.0
      %275 = vmatpush.msra.mxu0 0.0
      %276 = vmatpush.msra.mxu0 0.0
      %277 = vmatpush.msra.mxu0 0.0
      %278 = vmatpush.msra.mxu0 0.0
      %279 = vmatpush.msra.mxu0 %v243
      %280 = vmatpush.msra.mxu0 %v236
      %281 = vmatmul.f32.gmra.mxu0 %v239
      %v282 = vpop.f32.mrf.mxu0
      %v283 = vadd.f32 0.0, %v282
      %284 = vdwg.mxu0
      %v285 = vsel %vm234, %v263, 0.0
      %v286 = vsel %vm234, %v283, 0.0
      %v287 = vadd.f32 %v285, %v286
      %288 = vadd.xlane.f32.xlu0 %v287
      %v289 = vpop.xlane.xlu0 %288
      %v290 = vadd.f32 %v289, 0.0
      %v291 = vmul.f32 %v263, %v263
      %v292 = vmul.f32 %v283, %v283
      %v293 = vsel %vm234, %v291, 0.0
      %v294 = vsel %vm234, %v292, 0.0
      %v295 = vadd.f32 %v293, %v294
      %296 = vadd.xlane.f32.xlu0 %v295
      %v297 = vpop.xlane.xlu0 %296
      %v298 = vadd.f32 %v297, 0.0
      %v299 = vrot.slane %v169, 1
      %v300 = vsel %vm187, %v171, %v299
      %v301 = vrot.slane %v173, 7
      %v302 = vsel %vm190, %v301, %v300
      %v303 = vrot.slane %v175, 6
      %v304 = vsel %vm193, %v303, %v302
      %v305 = vrot.slane %v170, 1
      %v306 = vsel %vm187, %v172, %v305
      %v307 = vrot.slane %v174, 7
      %v308 = vsel %vm190, %v307, %v306
      %v309 = vrot.slane %v176, 6
      %v310 = vsel %vm193, %v309, %v308
      %v313 = vrot.slane %v169, 6
      %v314 = vrot.slane %v171, 5
      %v315 = vsel %vm205, %v314, %v313
      %v316 = vrot.slane %v173, 4
      %v317 = vsel %vm208, %v316, %v315
      %v318 = vrot.slane %v175, 3
      %v319 = vsel %vm211, %v318, %v317
      %v320 = vrot.slane %v170, 6
      %v321 = vrot.slane %v172, 5
      %v322 = vsel %vm205, %v321, %v320
      %v323 = vrot.slane %v174, 4
      %v324 = vsel %vm208, %v323, %v322
      %v325 = vrot.slane %v176, 3
      %v326 = vsel %vm211, %v325, %v324
      %v329 = vrot.slane %v169, 3
      %v330 = vrot.slane %v171, 2
      %v331 = vsel %vm187, %v330, %v329
      %v332 = vrot.slane %v173, 1
      %v333 = vsel %vm190, %v332, %v331
      %v334 = vsel %vm193, %v175, %v333
      %v335 = vrot.slane %v170, 3
      %v336 = vrot.slane %v172, 2
      %v337 = vsel %vm187, %v336, %v335
      %v338 = vrot.slane %v174, 1
      %v339 = vsel %vm190, %v338, %v337
      %v340 = vsel %vm193, %v176, %v339
      %v341 = vsel %vm234, %v304, %v319
      %v342 = vsel %vm234, %v310, %v326
      %v343 = vsel %vm234, %v334, 0
      %v345 = vsel %vm234, %v340, 0
      %347 = vmatpush.msra.mxu0 0.0
      %348 = vmatpush.msra.mxu0 0.0
      %349 = vmatpush.msra.mxu0 0.0
      %350 = vmatpush.msra.mxu0 0.0
      %351 = vmatpush.msra.mxu0 0.0
      %352 = vmatpush.msra.mxu0 0.0
      %353 = vmatpush.msra.mxu0 0.0
      %354 = vmatpush.msra.mxu0 0.0
      %355 = vmatpush.msra.mxu0 0.0
      %356 = vmatpush.msra.mxu0 0.0
      %357 = vmatpush.msra.mxu0 0.0
      %358 = vmatpush.msra.mxu0 0.0
      %359 = vmatpush.msra.mxu0 0.0
      %360 = vmatpush.msra.mxu0 0.0
      %361 = vmatpush.msra.mxu0 %v343
      %362 = vmatpush.msra.mxu0 %v341
      %363 = vmatmul.f32.gmra.mxu0 %v239
      %v364 = vpop.f32.mrf.mxu0
      %v365 = vadd.f32 0.0, %v364
      %366 = vdwg.mxu0
      %367 = vmatpush.msra.mxu0 0.0
      %368 = vmatpush.msra.mxu0 0.0
      %369 = vmatpush.msra.mxu0 0.0
      %370 = vmatpush.msra.mxu0 0.0
      %371 = vmatpush.msra.mxu0 0.0
      %372 = vmatpush.msra.mxu0 0.0
      %373 = vmatpush.msra.mxu0 0.0
      %374 = vmatpush.msra.mxu0 0.0
      %375 = vmatpush.msra.mxu0 0.0
      %376 = vmatpush.msra.mxu0 0.0
      %377 = vmatpush.msra.mxu0 0.0
      %378 = vmatpush.msra.mxu0 0.0
      %379 = vmatpush.msra.mxu0 0.0
      %380 = vmatpush.msra.mxu0 0.0
      %381 = vmatpush.msra.mxu0 %v345
      %382 = vmatpush.msra.mxu0 %v342
      %383 = vmatmul.f32.gmra.mxu0 %v239
      %v384 = vpop.f32.mrf.mxu0
      %v385 = vadd.f32 0.0, %v384
      %386 = vdwg.mxu0
      %v387 = vsel %vm234, %v365, 0.0
      %v388 = vsel %vm234, %v385, 0.0
      %v389 = vadd.f32 %v387, %v388
      %390 = vadd.xlane.f32.xlu0 %v389
      %v391 = vpop.xlane.xlu0 %390
      %v392 = vadd.f32 %v290, %v391
      %v393 = vmul.f32 %v365, %v365
      %v394 = vmul.f32 %v385, %v385
      %v395 = vsel %vm234, %v393, 0.0
      %v396 = vsel %vm234, %v394, 0.0
      %v397 = vadd.f32 %v395, %v396
      %398 = vadd.xlane.f32.xlu0 %v397
      %v399 = vpop.xlane.xlu0 %398
      %v400 = vadd.f32 %v298, %v399
      %v403 = vrot.slane %v169, 7
      %v404 = vrot.slane %v171, 6
      %v405 = vsel %vm205, %v404, %v403
      %v406 = vrot.slane %v173, 5
      %v407 = vsel %vm208, %v406, %v405
      %v408 = vrot.slane %v175, 4
      %v409 = vsel %vm211, %v408, %v407
      %v410 = vrot.slane %v170, 7
      %v411 = vrot.slane %v172, 6
      %v412 = vsel %vm205, %v411, %v410
      %v413 = vrot.slane %v174, 5
      %v414 = vsel %vm208, %v413, %v412
      %v415 = vrot.slane %v176, 4
      %v416 = vsel %vm211, %v415, %v414
      %v419 = vrot.slane %v169, 4
      %v420 = vrot.slane %v171, 3
      %v421 = vsel %vm187, %v420, %v419
      %v422 = vrot.slane %v173, 2
      %v423 = vsel %vm190, %v422, %v421
      %v424 = vrot.slane %v175, 1
      %v425 = vsel %vm193, %v424, %v423
      %v426 = vrot.slane %v170, 4
      %v427 = vrot.slane %v172, 3
      %v428 = vsel %vm187, %v427, %v426
      %v429 = vrot.slane %v174, 2
      %v430 = vsel %vm190, %v429, %v428
      %v431 = vrot.slane %v176, 1
      %v432 = vsel %vm193, %v431, %v430
      %v433 = vsel %vm234, %v227, %v409
      %v434 = vsel %vm234, %v233, %v416
      %v435 = vsel %vm234, %v425, 0
      %v437 = vsel %vm234, %v432, 0
      %439 = vmatpush.msra.mxu0 0.0
      %440 = vmatpush.msra.mxu0 0.0
      %441 = vmatpush.msra.mxu0 0.0
      %442 = vmatpush.msra.mxu0 0.0
      %443 = vmatpush.msra.mxu0 0.0
      %444 = vmatpush.msra.mxu0 0.0
      %445 = vmatpush.msra.mxu0 0.0
      %446 = vmatpush.msra.mxu0 0.0
      %447 = vmatpush.msra.mxu0 0.0
      %448 = vmatpush.msra.mxu0 0.0
      %449 = vmatpush.msra.mxu0 0.0
      %450 = vmatpush.msra.mxu0 0.0
      %451 = vmatpush.msra.mxu0 0.0
      %452 = vmatpush.msra.mxu0 0.0
      %453 = vmatpush.msra.mxu0 %v435
      %454 = vmatpush.msra.mxu0 %v433
      %455 = vmatmul.f32.gmra.mxu0 %v239
      %v456 = vpop.f32.mrf.mxu0
      %v457 = vadd.f32 0.0, %v456
      %458 = vdwg.mxu0
      %459 = vmatpush.msra.mxu0 0.0
      %460 = vmatpush.msra.mxu0 0.0
      %461 = vmatpush.msra.mxu0 0.0
      %462 = vmatpush.msra.mxu0 0.0
      %463 = vmatpush.msra.mxu0 0.0
      %464 = vmatpush.msra.mxu0 0.0
      %465 = vmatpush.msra.mxu0 0.0
      %466 = vmatpush.msra.mxu0 0.0
      %467 = vmatpush.msra.mxu0 0.0
      %468 = vmatpush.msra.mxu0 0.0
      %469 = vmatpush.msra.mxu0 0.0
      %470 = vmatpush.msra.mxu0 0.0
      %471 = vmatpush.msra.mxu0 0.0
      %472 = vmatpush.msra.mxu0 0.0
      %473 = vmatpush.msra.mxu0 %v437
      %474 = vmatpush.msra.mxu0 %v434
      %475 = vmatmul.f32.gmra.mxu0 %v239
      %v476 = vpop.f32.mrf.mxu0
      %v477 = vadd.f32 0.0, %v476
      %478 = vdwg.mxu0
      %v479 = vsel %vm234, %v457, 0.0
      %v480 = vsel %vm234, %v477, 0.0
      %v481 = vadd.f32 %v479, %v480
      %482 = vadd.xlane.f32.xlu0 %v481
      %v483 = vpop.xlane.xlu0 %482
      %v484 = vadd.f32 %v392, %v483
      %v485 = vmul.f32 %v457, %v457
      %v486 = vmul.f32 %v477, %v477
      %v487 = vsel %vm234, %v485, 0.0
      %v488 = vsel %vm234, %v486, 0.0
      %v489 = vadd.f32 %v487, %v488
      %490 = vadd.xlane.f32.xlu0 %v489
      %v491 = vpop.xlane.xlu0 %490
      %v492 = vadd.f32 %v400, %v491
      %v495 = vsel %vm205, %v186, %v169
      %v496 = vsel %vm208, %v189, %v495
      %v497 = vsel %vm211, %v192, %v496
      %v498 = vsel %vm205, %v195, %v170
      %v499 = vsel %vm208, %v197, %v498
      %v500 = vsel %vm211, %v199, %v499
      %v503 = vsel %vm187, %v204, %v203
      %v504 = vsel %vm190, %v207, %v503
      %v505 = vsel %vm193, %v210, %v504
      %v506 = vsel %vm187, %v214, %v213
      %v507 = vsel %vm190, %v216, %v506
      %v508 = vsel %vm193, %v218, %v507
      %v509 = vsel %vm234, %v334, %v497
      %v510 = vsel %vm234, %v340, %v500
      %v511 = vsel %vm234, %v505, 0
      %v513 = vsel %vm234, %v508, 0
      %515 = vmatpush.msra.mxu0 0.0
      %516 = vmatpush.msra.mxu0 0.0
      %517 = vmatpush.msra.mxu0 0.0
      %518 = vmatpush.msra.mxu0 0.0
      %519 = vmatpush.msra.mxu0 0.0
      %520 = vmatpush.msra.mxu0 0.0
      %521 = vmatpush.msra.mxu0 0.0
      %522 = vmatpush.msra.mxu0 0.0
      %523 = vmatpush.msra.mxu0 0.0
      %524 = vmatpush.msra.mxu0 0.0
      %525 = vmatpush.msra.mxu0 0.0
      %526 = vmatpush.msra.mxu0 0.0
      %527 = vmatpush.msra.mxu0 0.0
      %528 = vmatpush.msra.mxu0 0.0
      %529 = vmatpush.msra.mxu0 %v511
      %530 = vmatpush.msra.mxu0 %v509
      %531 = vmatmul.f32.gmra.mxu0 %v239
      %v532 = vpop.f32.mrf.mxu0
      %v533 = vadd.f32 0.0, %v532
      %534 = vdwg.mxu0
      %535 = vmatpush.msra.mxu0 0.0
      %536 = vmatpush.msra.mxu0 0.0
      %537 = vmatpush.msra.mxu0 0.0
      %538 = vmatpush.msra.mxu0 0.0
      %539 = vmatpush.msra.mxu0 0.0
      %540 = vmatpush.msra.mxu0 0.0
      %541 = vmatpush.msra.mxu0 0.0
      %542 = vmatpush.msra.mxu0 0.0
      %543 = vmatpush.msra.mxu0 0.0
      %544 = vmatpush.msra.mxu0 0.0
      %545 = vmatpush.msra.mxu0 0.0
      %546 = vmatpush.msra.mxu0 0.0
      %547 = vmatpush.msra.mxu0 0.0
      %548 = vmatpush.msra.mxu0 0.0
      %549 = vmatpush.msra.mxu0 %v513
      %550 = vmatpush.msra.mxu0 %v510
      %551 = vmatmul.f32.gmra.mxu0 %v239
      %v552 = vpop.f32.mrf.mxu0
      %v553 = vadd.f32 0.0, %v552
      %554 = vdwg.mxu0
      %v555 = vsel %vm234, %v533, 0.0
      %v556 = vsel %vm234, %v553, 0.0
      %v557 = vadd.f32 %v555, %v556
      %558 = vadd.xlane.f32.xlu0 %v557
      %v559 = vpop.xlane.xlu0 %558
      %v560 = vadd.f32 %v484, %v559
      %v561 = vmul.f32 %v533, %v533
      %v562 = vmul.f32 %v553, %v553
      %v563 = vsel %vm234, %v561, 0.0
      %v564 = vsel %vm234, %v562, 0.0
      %v565 = vadd.f32 %v563, %v564
      %566 = vadd.xlane.f32.xlu0 %v565
      %v567 = vpop.xlane.xlu0 %566
      %v568 = vadd.f32 %v492, %v567
      %v571 = vsel %vm205, %v171, %v299
      %v572 = vsel %vm208, %v301, %v571
      %v573 = vsel %vm211, %v303, %v572
      %v574 = vsel %vm205, %v172, %v305
      %v575 = vsel %vm208, %v307, %v574
      %v576 = vsel %vm211, %v309, %v575
      %v579 = vsel %vm187, %v314, %v313
      %v580 = vsel %vm190, %v316, %v579
      %v581 = vsel %vm193, %v318, %v580
      %v582 = vsel %vm187, %v321, %v320
      %v583 = vsel %vm190, %v323, %v582
      %v584 = vsel %vm193, %v325, %v583
      %v585 = vsel %vm234, %v425, %v573
      %v586 = vsel %vm234, %v432, %v576
      %v587 = vsel %vm234, %v581, 0
      %v589 = vsel %vm234, %v584, 0
      %591 = vmatpush.msra.mxu0 0.0
      %592 = vmatpush.msra.mxu0 0.0
      %593 = vmatpush.msra.mxu0 0.0
      %594 = vmatpush.msra.mxu0 0.0
      %595 = vmatpush.msra.mxu0 0.0
      %596 = vmatpush.msra.mxu0 0.0
      %597 = vmatpush.msra.mxu0 0.0
      %598 = vmatpush.msra.mxu0 0.0
      %599 = vmatpush.msra.mxu0 0.0
      %600 = vmatpush.msra.mxu0 0.0
      %601 = vmatpush.msra.mxu0 0.0
      %602 = vmatpush.msra.mxu0 0.0
      %603 = vmatpush.msra.mxu0 0.0
      %604 = vmatpush.msra.mxu0 0.0
      %605 = vmatpush.msra.mxu0 %v587
      %606 = vmatpush.msra.mxu0 %v585
      %607 = vmatmul.f32.gmra.mxu0 %v239
      %v608 = vpop.f32.mrf.mxu0
      %v609 = vadd.f32 0.0, %v608
      %610 = vdwg.mxu0
      %611 = vmatpush.msra.mxu0 0.0
      %612 = vmatpush.msra.mxu0 0.0
      %613 = vmatpush.msra.mxu0 0.0
      %614 = vmatpush.msra.mxu0 0.0
      %615 = vmatpush.msra.mxu0 0.0
      %616 = vmatpush.msra.mxu0 0.0
      %617 = vmatpush.msra.mxu0 0.0
      %618 = vmatpush.msra.mxu0 0.0
      %619 = vmatpush.msra.mxu0 0.0
      %620 = vmatpush.msra.mxu0 0.0
      %621 = vmatpush.msra.mxu0 0.0
      %622 = vmatpush.msra.mxu0 0.0
      %623 = vmatpush.msra.mxu0 0.0
      %624 = vmatpush.msra.mxu0 0.0
      %625 = vmatpush.msra.mxu0 %v589
      %626 = vmatpush.msra.mxu0 %v586
      %627 = vmatmul.f32.gmra.mxu0 %v239
      %v628 = vpop.f32.mrf.mxu0
      %v629 = vadd.f32 0.0, %v628
      %630 = vdwg.mxu0
      %v631 = vsel %vm234, %v609, 0.0
      %v632 = vsel %vm234, %v629, 0.0
      %v633 = vadd.f32 %v631, %v632
      %634 = vadd.xlane.f32.xlu0 %v633
      %v635 = vpop.xlane.xlu0 %634
      %v636 = vadd.f32 %v560, %v635
      %v637 = vmul.f32 %v609, %v609
      %v638 = vmul.f32 %v629, %v629
      %v639 = vsel %vm234, %v637, 0.0
      %v640 = vsel %vm234, %v638, 0.0
      %v641 = vadd.f32 %v639, %v640
      %642 = vadd.xlane.f32.xlu0 %v641
      %v643 = vpop.xlane.xlu0 %642
      %v644 = vadd.f32 %v568, %v643
      %v647 = vsel %vm205, %v223, %v222
      %v648 = vsel %vm208, %v173, %v647
      %v649 = vsel %vm211, %v226, %v648
      %v650 = vsel %vm205, %v229, %v228
      %v651 = vsel %vm208, %v174, %v650
      %v652 = vsel %vm211, %v232, %v651
      %v655 = vsel %vm187, %v404, %v403
      %v656 = vsel %vm190, %v406, %v655
      %v657 = vsel %vm193, %v408, %v656
      %v658 = vsel %vm187, %v411, %v410
      %v659 = vsel %vm190, %v413, %v658
      %v660 = vsel %vm193, %v415, %v659
      %v661 = vsel %vm234, %v505, %v649
      %v662 = vsel %vm234, %v508, %v652
      %v663 = vsel %vm234, %v657, 0
      %v665 = vsel %vm234, %v660, 0
      %667 = vmatpush.msra.mxu0 0.0
      %668 = vmatpush.msra.mxu0 0.0
      %669 = vmatpush.msra.mxu0 0.0
      %670 = vmatpush.msra.mxu0 0.0
      %671 = vmatpush.msra.mxu0 0.0
      %672 = vmatpush.msra.mxu0 0.0
      %673 = vmatpush.msra.mxu0 0.0
      %674 = vmatpush.msra.mxu0 0.0
      %675 = vmatpush.msra.mxu0 0.0
      %676 = vmatpush.msra.mxu0 0.0
      %677 = vmatpush.msra.mxu0 0.0
      %678 = vmatpush.msra.mxu0 0.0
      %679 = vmatpush.msra.mxu0 0.0
      %680 = vmatpush.msra.mxu0 0.0
      %681 = vmatpush.msra.mxu0 %v663
      %682 = vmatpush.msra.mxu0 %v661
      %683 = vmatmul.f32.gmra.mxu0 %v239
      %v684 = vpop.f32.mrf.mxu0
      %v685 = vadd.f32 0.0, %v684
      %686 = vdwg.mxu0
      %687 = vmatpush.msra.mxu0 0.0
      %688 = vmatpush.msra.mxu0 0.0
      %689 = vmatpush.msra.mxu0 0.0
      %690 = vmatpush.msra.mxu0 0.0
      %691 = vmatpush.msra.mxu0 0.0
      %692 = vmatpush.msra.mxu0 0.0
      %693 = vmatpush.msra.mxu0 0.0
      %694 = vmatpush.msra.mxu0 0.0
      %695 = vmatpush.msra.mxu0 0.0
      %696 = vmatpush.msra.mxu0 0.0
      %697 = vmatpush.msra.mxu0 0.0
      %698 = vmatpush.msra.mxu0 0.0
      %699 = vmatpush.msra.mxu0 0.0
      %700 = vmatpush.msra.mxu0 0.0
      %701 = vmatpush.msra.mxu0 %v665
      %702 = vmatpush.msra.mxu0 %v662
      %703 = vmatmul.f32.gmra.mxu0 %v239
      %v704 = vpop.f32.mrf.mxu0
      %v705 = vadd.f32 0.0, %v704
      %706 = vdwg.mxu0
      %v707 = vsel %vm234, %v685, 0.0
      %v708 = vsel %vm234, %v705, 0.0
      %v709 = vadd.f32 %v707, %v708
      %710 = vadd.xlane.f32.xlu0 %v709
      %v711 = vpop.xlane.xlu0 %710
      %v712 = vadd.f32 %v636, %v711
      %v713 = vmul.f32 %v685, %v685
      %v714 = vmul.f32 %v705, %v705
      %v715 = vsel %vm234, %v713, 0.0
      %v716 = vsel %vm234, %v714, 0.0
      %v717 = vadd.f32 %v715, %v716
      %718 = vadd.xlane.f32.xlu0 %v717
      %v719 = vpop.xlane.xlu0 %718
      %v720 = vadd.f32 %v644, %v719
      %v721 = vld [vmem:[%s2] sm:$0xf]
      %vm722 = vcmask 64512
      %v724 = vsel %vm722, %v721, 0
      %726 = vmatpush.msra.mxu0 0.0
      %727 = vmatpush.msra.mxu0 0.0
      %728 = vmatpush.msra.mxu0 0.0
      %729 = vmatpush.msra.mxu0 0.0
      %730 = vmatpush.msra.mxu0 0.0
      %731 = vmatpush.msra.mxu0 0.0
      %732 = vmatpush.msra.mxu0 0.0
      %733 = vmatpush.msra.mxu0 0.0
      %734 = vmatpush.msra.mxu0 0.0
      %735 = vmatpush.msra.mxu0 0.0
      %736 = vmatpush.msra.mxu0 0.0
      %737 = vmatpush.msra.mxu0 0.0
      %738 = vmatpush.msra.mxu0 0.0
      %739 = vmatpush.msra.mxu0 0.0
      %740 = vmatpush.msra.mxu0 0.0
      %741 = vmatpush.msra.mxu0 %v661
      %742 = vmatmul.f32.gmra.mxu0 %v724
      %v743 = vpop.f32.mrf.mxu0
      %v744 = vadd.f32 0.0, %v743
      %745 = vdwg.mxu0
      %746 = vmatpush.msra.mxu0 0.0
      %747 = vmatpush.msra.mxu0 0.0
      %748 = vmatpush.msra.mxu0 0.0
      %749 = vmatpush.msra.mxu0 0.0
      %750 = vmatpush.msra.mxu0 0.0
      %751 = vmatpush.msra.mxu0 0.0
      %752 = vmatpush.msra.mxu0 0.0
      %753 = vmatpush.msra.mxu0 0.0
      %754 = vmatpush.msra.mxu0 0.0
      %755 = vmatpush.msra.mxu0 0.0
      %756 = vmatpush.msra.mxu0 0.0
      %757 = vmatpush.msra.mxu0 0.0
      %758 = vmatpush.msra.mxu0 0.0
      %759 = vmatpush.msra.mxu0 0.0
      %760 = vmatpush.msra.mxu0 0.0
      %761 = vmatpush.msra.mxu0 %v662
      %762 = vmatmul.f32.gmra.mxu0 %v724
      %v763 = vpop.f32.mrf.mxu0
      %v764 = vadd.f32 0.0, %v763
      %765 = vdwg.mxu0
      %v766 = vsel %vm234, %v744, 0.0
      %v767 = vsel %vm234, %v764, 0.0
      %v768 = vadd.f32 %v766, %v767
      %769 = vadd.xlane.f32.xlu0 %v768
      %v770 = vpop.xlane.xlu0 %769
      %v771 = vadd.f32 %v770, 0.0
      %v772 = vmul.f32 %v744, %v744
      %v773 = vmul.f32 %v764, %v764
      %v774 = vsel %vm234, %v772, 0.0
      %v775 = vsel %vm234, %v773, 0.0
      %v776 = vadd.f32 %v774, %v775
      %777 = vadd.xlane.f32.xlu0 %v776
      %v778 = vpop.xlane.xlu0 %777
      %v779 = vadd.f32 %v778, 0.0
      %v782 = vsel %vm205, %v330, %v329
      %v783 = vsel %vm208, %v332, %v782
      %v784 = vsel %vm211, %v175, %v783
      %v785 = vsel %vm205, %v336, %v335
      %v786 = vsel %vm208, %v338, %v785
      %v787 = vsel %vm211, %v176, %v786
      %v790 = vsel %vm234, %v581, %v784
      %v791 = vsel %vm234, %v584, %v787
      %792 = vmatpush.msra.mxu0 0.0
      %793 = vmatpush.msra.mxu0 0.0
      %794 = vmatpush.msra.mxu0 0.0
      %795 = vmatpush.msra.mxu0 0.0
      %796 = vmatpush.msra.mxu0 0.0
      %797 = vmatpush.msra.mxu0 0.0
      %798 = vmatpush.msra.mxu0 0.0
      %799 = vmatpush.msra.mxu0 0.0
      %800 = vmatpush.msra.mxu0 0.0
      %801 = vmatpush.msra.mxu0 0.0
      %802 = vmatpush.msra.mxu0 0.0
      %803 = vmatpush.msra.mxu0 0.0
      %804 = vmatpush.msra.mxu0 0.0
      %805 = vmatpush.msra.mxu0 0.0
      %806 = vmatpush.msra.mxu0 0.0
      %807 = vmatpush.msra.mxu0 %v790
      %808 = vmatmul.f32.gmra.mxu0 %v724
      %v809 = vpop.f32.mrf.mxu0
      %v810 = vadd.f32 0.0, %v809
      %811 = vdwg.mxu0
      %812 = vmatpush.msra.mxu0 0.0
      %813 = vmatpush.msra.mxu0 0.0
      %814 = vmatpush.msra.mxu0 0.0
      %815 = vmatpush.msra.mxu0 0.0
      %816 = vmatpush.msra.mxu0 0.0
      %817 = vmatpush.msra.mxu0 0.0
      %818 = vmatpush.msra.mxu0 0.0
      %819 = vmatpush.msra.mxu0 0.0
      %820 = vmatpush.msra.mxu0 0.0
      %821 = vmatpush.msra.mxu0 0.0
      %822 = vmatpush.msra.mxu0 0.0
      %823 = vmatpush.msra.mxu0 0.0
      %824 = vmatpush.msra.mxu0 0.0
      %825 = vmatpush.msra.mxu0 0.0
      %826 = vmatpush.msra.mxu0 0.0
      %827 = vmatpush.msra.mxu0 %v791
      %828 = vmatmul.f32.gmra.mxu0 %v724
      %v829 = vpop.f32.mrf.mxu0
      %v830 = vadd.f32 0.0, %v829
      %831 = vdwg.mxu0
      %v832 = vsel %vm234, %v810, 0.0
      %v833 = vsel %vm234, %v830, 0.0
      %v834 = vadd.f32 %v832, %v833
      %835 = vadd.xlane.f32.xlu0 %v834
      %v836 = vpop.xlane.xlu0 %835
      %v837 = vadd.f32 %v771, %v836
      %v838 = vmul.f32 %v810, %v810
      %v839 = vmul.f32 %v830, %v830
      %v840 = vsel %vm234, %v838, 0.0
      %v841 = vsel %vm234, %v839, 0.0
      %v842 = vadd.f32 %v840, %v841
      %843 = vadd.xlane.f32.xlu0 %v842
      %v844 = vpop.xlane.xlu0 %843
      %v845 = vadd.f32 %v779, %v844
      %vm846 = vcmask 7168
      %v847 = vsel %vm846, %v712, %v720
      %vm848 = vcmask 15360
      %v849 = vsel %vm848, %v847, %v837
      %vm850 = vcmask 23552
      %v851 = vsel %vm850, %v849, %v845
      %vm852 = vcmask 27648
      %853 = vst.msk [vmem:[%s168] sm:$0xf] %vm852, %v851
      %p854 = scmp.lt.s32.totalorder %s14, 1
      %s855 = scalar_select %p854, %s14, 1
      %s856 = smul.addr %s855, 4
      %s857 = scalar_lea.vmem %s3, %s856
      // Predicated region
      $region33: #{rnet_forward.2} parent=31 // pred_check
        %p858 = pneg %p100
      $region34: #{rnet_forward.2} parent=31 // pred_check_branch
        %860 = sbr.rel (%p858) target = $region36
      $region35: #{rnet_forward.2} parent=31 // pred_region
        _
      $region36: #{rnet_forward.2} parent=31 // pred_fallthru
        _
    $region32: #{rnet_forward.2} parent=5 // pred_fallthru
      _
    %p861 = scmp.le.s32.totalorder 2, %s9
    // Predicated region
    $region37: #{rnet_forward.2} parent=5 // pred_check
      %p862 = pneg %p861
    $region38: #{rnet_forward.2} parent=5 // pred_check_branch
      %864 = sbr.rel (%p862) target = $region40
    $region39: #{rnet_forward.2} parent=5 // pred_region
      %s865 = ssub.s32 %s9, 2
      // Predicated region
      $region41: #{rnet_forward.2} parent=39 // pred_check
        %p866 = pneg %p106
      $region42: #{rnet_forward.2} parent=39 // pred_check_branch
        %868 = sbr.rel (%p866) target = $region44
      $region43: #{rnet_forward.2} parent=39 // pred_region
        %p869 = scmp.lt.s32.totalorder %s15, 1
        %s870 = scalar_select %p869, %s15, 1
        %s871 = smul.addr %s870, 4
        %s872 = scalar_lea.vmem %s3, %s871
      $region44: #{rnet_forward.2} parent=39 // pred_fallthru
        _
    $region40: #{rnet_forward.2} parent=5 // pred_fallthru
      _
  $region6: #{rnet_forward.2} parent=0 // loop_footer
    %s13 = sadd.s32 1, %s9
  $region7: #{rnet_forward.2} parent=0 // loop_footer_branch
    %8 = sbr.rel target = $region3
  $region8: #{rnet_forward.2} parent=0 // loop_exit
    _

// kernel: rnet_forward.3
$region0: #{rnet_forward.3}
  #allocation0 [shape = 'u32[]', space=smem, size = 0x4, offset = 0x4, fixed_abs, tag = 'smem constant byte address 0x4 - core index']
  #allocation1 [shape = 'u32[72,128]{1,0:T(1,128)}', space=vmem, size = 0x9000, scoped, tag = 'internal scratch']
  %s0 = inlined_call_operand.vmem [shape: f32[2,4,8,256], index: 0, kind: input, shape index: {}]
  %s1 = inlined_call_operand.vmem [shape: f32[4,12], index: 1, kind: input, shape index: {}]
  %s2 = inlined_call_operand.vmem [shape: f32[4,8], index: 2, kind: input, shape index: {}]
  %s3 = inlined_call_operand.vmem [shape: f32[4,2], index: 3, kind: input, shape index: {}]
  %s4 = inlined_call_operand.vmem [shape: f32[4,2], index: 4, kind: input, shape index: {}]
  %s5 = inlined_call_operand.vmem [shape: f32[2,4,8,256], index: 5, kind: output, shape index: {}]
  %s6 = sld [smem:[#allocation0]]
  $region53: #{rnet_forward.3} parent=0
    _
  %s8 = ssub.s32 1, %s6
  %s9 = scalar_select 0, %s8, %s6
  loop: start=0, step=1, limit=4
  $region2: #{rnet_forward.3} parent=0 // loop_pre_header
    _
  $region3: #{rnet_forward.3} parent=0 // loop_header
    %s11 = sphi 0, %s15
    %p12 = scmp.ge.s32.totalorder %s11, 4
    %s21 = sphi 0, %s23
    %s24 = sphi 0, %s21
    %s25 = sphi 0, %s24
    %s41 = sphi 0, %s25
    %s45 = sphi 0, %s45
    %s47 = sphi 0, %s45
    %s48 = sphi 0, %s47
    %s62 = sphi 0, %s48
    %s66 = sphi 0, %s66
    %s68 = sphi 0, %s66
    %s69 = sphi 0, %s68
    %s83 = sphi 0, %s69
    %s87 = sphi 0, %s87
    %s89 = sphi 0, %s87
    %s90 = sphi 0, %s89
    %s104 = sphi 0, %s90
    %s108 = sphi 0, %s108
    %s110 = sphi 0, %s108
    %s111 = sphi 0, %s110
    %s125 = sphi 0, %s111
    %s131 = sphi 0, %s133
    %s134 = sphi 0, %s131
    %s135 = sphi 0, %s134
    %s151 = sphi 0, %s135
  $region4: #{rnet_forward.3} parent=0 // loop_header_branch
    %14 = sbr.rel (%p12) target = $region8
  $region5: #{rnet_forward.3} parent=0 // loop_body
    %s16 = ssub.s32 %s11, 1
    %s17 = ssub.s32 %s11, 2
    %s18 = sadd.s32 %s11, 1
    %s19 = ssub.s32 %s11, %s18
    %p20 = scmp.eq.s32.totalorder %s19, 0
    %s22 = sadd.s32 %s21, 1
    %s23 = scalar_select %p20, %s21, %s22
    %p26 = pneg %p20
    %p27 = scmp.eq.s32.totalorder %s11, 1
    %p28 = por %p26, %p27
    %p29 = scmp.ne.s32.totalorder %s21, %s24
    %p30 = scmp.eq.s32.totalorder %s11, 0
    %p31 = por %p29, %p30
    %p32 = scmp.ne.s32.totalorder %s21, %s24
    %p33 = scmp.eq.s32.totalorder %s16, 1
    %p34 = por %p32, %p33
    %p35 = scmp.ne.s32.totalorder %s24, %s25
    %p36 = scmp.eq.s32.totalorder %s16, 0
    %p37 = por %p35, %p36
    %p38 = scmp.ne.s32.totalorder %s24, %s25
    %p39 = scmp.eq.s32.totalorder %s17, 1
    %p40 = por %p38, %p39
    %p42 = scmp.ne.s32.totalorder %s25, %s41
    %p43 = scmp.eq.s32.totalorder %s17, 0
    %p44 = por %p42, %p43
    %s46 = sadd.s32 %s45, 1
    %p49 = scmp.eq.s32.totalorder %s11, 1
    %p50 = scmp.ne.s32.totalorder %s45, %s47
    %p51 = scmp.eq.s32.totalorder %s11, 0
    %p52 = por %p50, %p51
    %p53 = scmp.ne.s32.totalorder %s45, %s47
    %p54 = scmp.eq.s32.totalorder %s16, 1
    %p55 = por %p53, %p54
    %p56 = scmp.ne.s32.totalorder %s47, %s48
    %p57 = scmp.eq.s32.totalorder %s16, 0
    %p58 = por %p56, %p57
    %p59 = scmp.ne.s32.totalorder %s47, %s48
    %p60 = scmp.eq.s32.totalorder %s17, 1
    %p61 = por %p59, %p60
    %p63 = scmp.ne.s32.totalorder %s48, %s62
    %p64 = scmp.eq.s32.totalorder %s17, 0
    %p65 = por %p63, %p64
    %s67 = sadd.s32 %s66, 1
    %p70 = scmp.eq.s32.totalorder %s11, 1
    %p71 = scmp.ne.s32.totalorder %s66, %s68
    %p72 = scmp.eq.s32.totalorder %s11, 0
    %p73 = por %p71, %p72
    %p74 = scmp.ne.s32.totalorder %s66, %s68
    %p75 = scmp.eq.s32.totalorder %s16, 1
    %p76 = por %p74, %p75
    %p77 = scmp.ne.s32.totalorder %s68, %s69
    %p78 = scmp.eq.s32.totalorder %s16, 0
    %p79 = por %p77, %p78
    %p80 = scmp.ne.s32.totalorder %s68, %s69
    %p81 = scmp.eq.s32.totalorder %s17, 1
    %p82 = por %p80, %p81
    %p84 = scmp.ne.s32.totalorder %s69, %s83
    %p85 = scmp.eq.s32.totalorder %s17, 0
    %p86 = por %p84, %p85
    %s88 = sadd.s32 %s87, 1
    %p91 = scmp.eq.s32.totalorder %s11, 1
    %p92 = scmp.ne.s32.totalorder %s87, %s89
    %p93 = scmp.eq.s32.totalorder %s11, 0
    %p94 = por %p92, %p93
    %p95 = scmp.ne.s32.totalorder %s87, %s89
    %p96 = scmp.eq.s32.totalorder %s16, 1
    %p97 = por %p95, %p96
    %p98 = scmp.ne.s32.totalorder %s89, %s90
    %p99 = scmp.eq.s32.totalorder %s16, 0
    %p100 = por %p98, %p99
    %p101 = scmp.ne.s32.totalorder %s89, %s90
    %p102 = scmp.eq.s32.totalorder %s17, 1
    %p103 = por %p101, %p102
    %p105 = scmp.ne.s32.totalorder %s90, %s104
    %p106 = scmp.eq.s32.totalorder %s17, 0
    %p107 = por %p105, %p106
    %s109 = sadd.s32 %s108, 1
    %p112 = scmp.eq.s32.totalorder %s11, 1
    %p113 = scmp.ne.s32.totalorder %s108, %s110
    %p114 = scmp.eq.s32.totalorder %s11, 0
    %p115 = por %p113, %p114
    %p116 = scmp.ne.s32.totalorder %s108, %s110
    %p117 = scmp.eq.s32.totalorder %s16, 1
    %p118 = por %p116, %p117
    %p119 = scmp.ne.s32.totalorder %s110, %s111
    %p120 = scmp.eq.s32.totalorder %s16, 0
    %p121 = por %p119, %p120
    %p122 = scmp.ne.s32.totalorder %s110, %s111
    %p123 = scmp.eq.s32.totalorder %s17, 1
    %p124 = por %p122, %p123
    %p126 = scmp.ne.s32.totalorder %s111, %s125
    %p127 = scmp.eq.s32.totalorder %s17, 0
    %p128 = por %p126, %p127
    %s129 = ssub.s32 %s11, %s18
    %p130 = scmp.eq.s32.totalorder %s129, 0
    %s132 = sadd.s32 %s131, 1
    %s133 = scalar_select %p130, %s131, %s132
    %p136 = pneg %p130
    %p137 = scmp.eq.s32.totalorder %s11, 1
    %p138 = por %p136, %p137
    %p139 = scmp.ne.s32.totalorder %s131, %s134
    %p140 = scmp.eq.s32.totalorder %s11, 0
    %p141 = por %p139, %p140
    %p142 = scmp.ne.s32.totalorder %s131, %s134
    %p143 = scmp.eq.s32.totalorder %s16, 1
    %p144 = por %p142, %p143
    %p145 = scmp.ne.s32.totalorder %s134, %s135
    %p146 = scmp.eq.s32.totalorder %s16, 0
    %p147 = por %p145, %p146
    %p148 = scmp.ne.s32.totalorder %s134, %s135
    %p149 = scmp.eq.s32.totalorder %s17, 1
    %p150 = por %p148, %p149
    %p152 = scmp.ne.s32.totalorder %s135, %s151
    %p153 = scmp.eq.s32.totalorder %s17, 0
    %p154 = por %p152, %p153
    %p155 = scmp.le.s32.totalorder 1, %s11
    %p156 = scmp.lt.s32.totalorder %s11, 3
    %p157 = pnand %p155, %p156
    %p158 = pneg %p157
    // Predicated region
    $region9: #{rnet_forward.3} parent=5 // pred_check
      _
    $region10: #{rnet_forward.3} parent=5 // pred_check_branch
      %160 = sbr.rel (%p157) target = $region12
    $region11: #{rnet_forward.3} parent=5 // pred_region
      %s161 = ssub.s32 %s11, 1
      // Predicated region
      $region13: #{rnet_forward.3} parent=11 // pred_check
        %p162 = pneg %p58
      $region14: #{rnet_forward.3} parent=11 // pred_check_branch
        %164 = sbr.rel (%p162) target = $region16
      $region15: #{rnet_forward.3} parent=11 // pred_region
        _
      $region16: #{rnet_forward.3} parent=11 // pred_fallthru
        _
      // Predicated region
      $region17: #{rnet_forward.3} parent=11 // pred_check
        %p165 = pneg %p79
      $region18: #{rnet_forward.3} parent=11 // pred_check_branch
        %167 = sbr.rel (%p165) target = $region20
      $region19: #{rnet_forward.3} parent=11 // pred_region
        _
      $region20: #{rnet_forward.3} parent=11 // pred_fallthru
        _
      // Predicated region
      $region21: #{rnet_forward.3} parent=11 // pred_check
        %p168 = pneg %p100
      $region22: #{rnet_forward.3} parent=11 // pred_check_branch
        %170 = sbr.rel (%p168) target = $region24
      $region23: #{rnet_forward.3} parent=11 // pred_region
        _
      $region24: #{rnet_forward.3} parent=11 // pred_fallthru
        _
      // Predicated region
      $region25: #{rnet_forward.3} parent=11 // pred_check
        %p171 = pneg %p121
      $region26: #{rnet_forward.3} parent=11 // pred_check_branch
        %173 = sbr.rel (%p171) target = $region28
      $region27: #{rnet_forward.3} parent=11 // pred_region
        _
      $region28: #{rnet_forward.3} parent=11 // pred_fallthru
        _
    $region12: #{rnet_forward.3} parent=5 // pred_fallthru
      _
    %p174 = scmp.lt.s32.totalorder %s11, 2
    // Predicated region
    $region29: #{rnet_forward.3} parent=5 // pred_check
      %p175 = pneg %p174
    $region30: #{rnet_forward.3} parent=5 // pred_check_branch
      %177 = sbr.rel (%p175) target = $region32
    $region31: #{rnet_forward.3} parent=5 // pred_region
      // Predicated region
      $region33: #{rnet_forward.3} parent=31 // pred_check
        %p178 = pneg %p31
      $region34: #{rnet_forward.3} parent=31 // pred_check_branch
        %180 = sbr.rel (%p178) target = $region36
      $region35: #{rnet_forward.3} parent=31 // pred_region
        %p181 = scmp.lt.s32.totalorder %s11, 1
        %s182 = scalar_select %p181, %s11, 1
        %s183 = smul.addr %s182, 8
        %s184 = smul.addr %s183, 8
        %s185 = scalar_lea.vmem %s0, %s184
      $region36: #{rnet_forward.3} parent=31 // pred_fallthru
        _
    $region32: #{rnet_forward.3} parent=5 // pred_fallthru
      _
    %p186 = scmp.le.s32.totalorder 1, %s11
    %p187 = scmp.lt.s32.totalorder %s11, 3
    %p188 = pnand %p186, %p187
    %p189 = pneg %p188
    // Predicated region
    $region37: #{rnet_forward.3} parent=5 // pred_check
      _
    $region38: #{rnet_forward.3} parent=5 // pred_check_branch
      %191 = sbr.rel (%p188) target = $region40
    $region39: #{rnet_forward.3} parent=5 // pred_region
      %s192 = ssub.s32 %s11, 1
      %p193 = scmp.lt.s32.totalorder %s16, 1
      %s194 = scalar_select %p193, %s16, 1
      %s195 = smul.addr %s194, 8
      %s196 = smul.addr %s195, 8
      %s197 = scalar_lea.vmem %s0, %s196
      %p198 = pneg %p37
      %p199 = pneg %p34
      %p200 = pneg %p58
      %p201 = pneg %p55
      %p202 = pneg %p79
      %p203 = pneg %p76
      %p204 = pneg %p100
      %p205 = pneg %p97
      %p206 = pneg %p121
      %p207 = pneg %p118
      %p208 = pneg %p147
      %p209 = pneg %p144
      %p210 = scmp.lt.s32.totalorder %s16, 1
      %s211 = scalar_select %p210, %s16, 1
      %s212 = smul.addr %s211, 8
      %s213 = smul.addr %s212, 8
      %s214 = scalar_lea.vmem %s5, %s213
      %p215 = scmp.lt.s32.totalorder %s16, 1
      %s216 = scalar_select %p215, %s16, 1
      %s217 = smul.addr %s216, 8
      %s218 = smul.addr %s217, 8
      %s219 = scalar_lea.vmem %s0, %s218
      %p220 = scmp.lt.s32.totalorder %s16, 1
      %s221 = scalar_select %p220, %s16, 1
      %s222 = smul.addr %s221, 8
      %s223 = smul.addr %s222, 8
      %s224 = scalar_lea.vmem %s5, %s223
      %v225 = vld [vmem:[%s219] sm:$0xff]
      %v226 = vld [vmem:[%s219 + $0x8] sm:$0xff]
      %v227 = vld [vmem:[%s219 + $0x10] sm:$0xff]
      %v228 = vld [vmem:[%s219 + $0x18] sm:$0xff]
      %v229 = vld [vmem:[%s219 + $0x20] sm:$0xff]
      %v230 = vld [vmem:[%s219 + $0x28] sm:$0xff]
      %v231 = vld [vmem:[%s219 + $0x30] sm:$0xff]
      %v232 = vld [vmem:[%s219 + $0x38] sm:$0xff]
      %v233 = vld [vmem:[%s1] sm:$0xf]
      %v234 = vld [vmem:[%s3] sm:$0xf]
      %v243 = vrot.slane %v227, 7
      %vm244 = vcmask 1041409
      %v245 = vsel %vm244, %v243, %v225
      %v246 = vrot.slane %v229, 6
      %vm247 = vcmask 1042434
      %v248 = vsel %vm247, %v246, %v245
      %v249 = vrot.slane %v231, 5
      %vm250 = vcmask 1043459
      %v251 = vsel %vm250, %v249, %v248
      %v252 = vrot.slane %v228, 7
      %v253 = vsel %vm244, %v252, %v226
      %v254 = vrot.slane %v230, 6
      %v255 = vsel %vm247, %v254, %v253
      %v256 = vrot.slane %v232, 5
      %v257 = vsel %vm250, %v256, %v255
      %v260 = vrot.slane %v225, 5
      %v261 = vrot.slane %v227, 4
      %vm262 = vcmask 1045509
      %v263 = vsel %vm262, %v261, %v260
      %v264 = vrot.slane %v229, 3
      %vm265 = vcmask 1046534
      %v266 = vsel %vm265, %v264, %v263
      %v267 = vrot.slane %v231, 2
      %vm268 = vcmask 1047559
      %v269 = vsel %vm268, %v267, %v266
      %v270 = vrot.slane %v226, 5
      %v271 = vrot.slane %v228, 4
      %v272 = vsel %vm262, %v271, %v270
      %v273 = vrot.slane %v230, 3
      %v274 = vsel %vm265, %v273, %v272
      %v275 = vrot.slane %v232, 2
      %v276 = vsel %vm268, %v275, %v274
      %v279 = vrot.slane %v225, 2
      %v280 = vrot.slane %v227, 1
      %v281 = vsel %vm244, %v280, %v279
      %v282 = vsel %vm247, %v229, %v281
      %v283 = vrot.slane %v231, 7
      %v284 = vsel %vm250, %v283, %v282
      %v285 = vrot.slane %v226, 2
      %v286 = vrot.slane %v228, 1
      %v287 = vsel %vm244, %v286, %v285
      %v288 = vsel %vm247, %v230, %v287
      %v289 = vrot.slane %v232, 7
      %v290 = vsel %vm250, %v289, %v288
      %vm291 = vcmask 1043456
      %v292 = vsel %vm291, %v251, %v269
      %v293 = vsel %vm291, %v257, %v276
      %vm294 = vcmask 97280
      %v296 = vsel %vm294, %v233, 0
      %v298 = vsel %vm291, %v284, 0
      %v300 = vsel %vm291, %v290, 0
      %302 = vmatpush.msra.mxu0 0.0
      %303 = vmatpush.msra.mxu0 0.0
      %304 = vmatpush.msra.mxu0 0.0
      %305 = vmatpush.msra.mxu0 0.0
      %306 = vmatpush.msra.mxu0 0.0
      %307 = vmatpush.msra.mxu0 0.0
      %308 = vmatpush.msra.mxu0 0.0
      %309 = vmatpush.msra.mxu0 0.0
      %310 = vmatpush.msra.mxu0 0.0
      %311 = vmatpush.msra.mxu0 0.0
      %312 = vmatpush.msra.mxu0 0.0
      %313 = vmatpush.msra.mxu0 0.0
      %314 = vmatpush.msra.mxu0 0.0
      %315 = vmatpush.msra.mxu0 0.0
      %316 = vmatpush.msra.mxu0 %v298
      %317 = vmatpush.msra.mxu0 %v292
      %318 = vmatmul.f32.gmra.mxu0 %v296
      %v319 = vpop.f32.mrf.mxu0
      %v320 = vadd.f32 0.0, %v319
      %321 = vdwg.mxu0
      %322 = vmatpush.msra.mxu0 0.0
      %323 = vmatpush.msra.mxu0 0.0
      %324 = vmatpush.msra.mxu0 0.0
      %325 = vmatpush.msra.mxu0 0.0
      %326 = vmatpush.msra.mxu0 0.0
      %327 = vmatpush.msra.mxu0 0.0
      %328 = vmatpush.msra.mxu0 0.0
      %329 = vmatpush.msra.mxu0 0.0
      %330 = vmatpush.msra.mxu0 0.0
      %331 = vmatpush.msra.mxu0 0.0
      %332 = vmatpush.msra.mxu0 0.0
      %333 = vmatpush.msra.mxu0 0.0
      %334 = vmatpush.msra.mxu0 0.0
      %335 = vmatpush.msra.mxu0 0.0
      %336 = vmatpush.msra.mxu0 %v300
      %337 = vmatpush.msra.mxu0 %v293
      %338 = vmatmul.f32.gmra.mxu0 %v296
      %v339 = vpop.f32.mrf.mxu0
      %v340 = vadd.f32 0.0, %v339
      %341 = vdwg.mxu0
      %343 = vset.pattern.permute.xlu0 0
      %344 = vperm.xlu0 %343, %v234
      %v345 = vpop.permute.xlu0 %344
      %v347 = vmul.f32 %v320, %v345
      %v348 = vmul.f32 %v340, %v345
      %349 = vset.pattern.permute.xlu0 1
      %350 = vperm.xlu0 %349, %v234
      %v351 = vpop.permute.xlu0 %350
      %v353 = vadd.f32 %v347, %v351
      %v354 = vadd.f32 %v348, %v351
      %vm355 = vcmp.gt.f32.partialorder %v353, 0.0
      %vm356 = vcmp.gt.f32.partialorder %v354, 0.0
      %v357 = vmul.f32 %v353, 0.01
      %v358 = vmul.f32 %v354, 0.01
      %v359 = vsel %vm355, %v353, %v357
      %v360 = vsel %vm356, %v354, %v358
      %v361 = vrot.slane %v225, 1
      %v362 = vsel %vm244, %v227, %v361
      %v363 = vrot.slane %v229, 7
      %v364 = vsel %vm247, %v363, %v362
      %v365 = vrot.slane %v231, 6
      %v366 = vsel %vm250, %v365, %v364
      %v367 = vrot.slane %v226, 1
      %v368 = vsel %vm244, %v228, %v367
      %v369 = vrot.slane %v230, 7
      %v370 = vsel %vm247, %v369, %v368
      %v371 = vrot.slane %v232, 6
      %v372 = vsel %vm250, %v371, %v370
      %v375 = vrot.slane %v225, 6
      %v376 = vrot.slane %v227, 5
      %v377 = vsel %vm262, %v376, %v375
      %v378 = vrot.slane %v229, 4
      %v379 = vsel %vm265, %v378, %v377
      %v380 = vrot.slane %v231, 3
      %v381 = vsel %vm268, %v380, %v379
      %v382 = vrot.slane %v226, 6
      %v383 = vrot.slane %v228, 5
      %v384 = vsel %vm262, %v383, %v382
      %v385 = vrot.slane %v230, 4
      %v386 = vsel %vm265, %v385, %v384
      %v387 = vrot.slane %v232, 3
      %v388 = vsel %vm268, %v387, %v386
      %v391 = vrot.slane %v225, 3
      %v392 = vrot.slane %v227, 2
      %v393 = vsel %vm244, %v392, %v391
      %v394 = vrot.slane %v229, 1
      %v395 = vsel %vm247, %v394, %v393
      %v396 = vsel %vm250, %v231, %v395
      %v397 = vrot.slane %v226, 3
      %v398 = vrot.slane %v228, 2
      %v399 = vsel %vm244, %v398, %v397
      %v400 = vrot.slane %v230, 1
      %v401 = vsel %vm247, %v400, %v399
      %v402 = vsel %vm250, %v232, %v401
      %v403 = vsel %vm291, %v366, %v381
      %v404 = vsel %vm291, %v372, %v388
      %v405 = vsel %vm291, %v396, 0
      %v407 = vsel %vm291, %v402, 0
      %409 = vmatpush.msra.mxu0 0.0
      %410 = vmatpush.msra.mxu0 0.0
      %411 = vmatpush.msra.mxu0 0.0
      %412 = vmatpush.msra.mxu0 0.0
      %413 = vmatpush.msra.mxu0 0.0
      %414 = vmatpush.msra.mxu0 0.0
      %415 = vmatpush.msra.mxu0 0.0
      %416 = vmatpush.msra.mxu0 0.0
      %417 = vmatpush.msra.mxu0 0.0
      %418 = vmatpush.msra.mxu0 0.0
      %419 = vmatpush.msra.mxu0 0.0
      %420 = vmatpush.msra.mxu0 0.0
      %421 = vmatpush.msra.mxu0 0.0
      %422 = vmatpush.msra.mxu0 0.0
      %423 = vmatpush.msra.mxu0 %v405
      %424 = vmatpush.msra.mxu0 %v403
      %425 = vmatmul.f32.gmra.mxu0 %v296
      %v426 = vpop.f32.mrf.mxu0
      %v427 = vadd.f32 0.0, %v426
      %428 = vdwg.mxu0
      %429 = vmatpush.msra.mxu0 0.0
      %430 = vmatpush.msra.mxu0 0.0
      %431 = vmatpush.msra.mxu0 0.0
      %432 = vmatpush.msra.mxu0 0.0
      %433 = vmatpush.msra.mxu0 0.0
      %434 = vmatpush.msra.mxu0 0.0
      %435 = vmatpush.msra.mxu0 0.0
      %436 = vmatpush.msra.mxu0 0.0
      %437 = vmatpush.msra.mxu0 0.0
      %438 = vmatpush.msra.mxu0 0.0
      %439 = vmatpush.msra.mxu0 0.0
      %440 = vmatpush.msra.mxu0 0.0
      %441 = vmatpush.msra.mxu0 0.0
      %442 = vmatpush.msra.mxu0 0.0
      %443 = vmatpush.msra.mxu0 %v407
      %444 = vmatpush.msra.mxu0 %v404
      %445 = vmatmul.f32.gmra.mxu0 %v296
      %v446 = vpop.f32.mrf.mxu0
      %v447 = vadd.f32 0.0, %v446
      %448 = vdwg.mxu0
      %v449 = vmul.f32 %v427, %v345
      %v450 = vmul.f32 %v447, %v345
      %v451 = vadd.f32 %v449, %v351
      %v452 = vadd.f32 %v450, %v351
      %vm453 = vcmp.gt.f32.partialorder %v451, 0.0
      %vm454 = vcmp.gt.f32.partialorder %v452, 0.0
      %v455 = vmul.f32 %v451, 0.01
      %v456 = vmul.f32 %v452, 0.01
      %v457 = vsel %vm453, %v451, %v455
      %v458 = vsel %vm454, %v452, %v456
      %v461 = vrot.slane %v225, 7
      %v462 = vrot.slane %v227, 6
      %v463 = vsel %vm262, %v462, %v461
      %v464 = vrot.slane %v229, 5
      %v465 = vsel %vm265, %v464, %v463
      %v466 = vrot.slane %v231, 4
      %v467 = vsel %vm268, %v466, %v465
      %v468 = vrot.slane %v226, 7
      %v469 = vrot.slane %v228, 6
      %v470 = vsel %vm262, %v469, %v468
      %v471 = vrot.slane %v230, 5
      %v472 = vsel %vm265, %v471, %v470
      %v473 = vrot.slane %v232, 4
      %v474 = vsel %vm268, %v473, %v472
      %v477 = vrot.slane %v225, 4
      %v478 = vrot.slane %v227, 3
      %v479 = vsel %vm244, %v478, %v477
      %v480 = vrot.slane %v229, 2
      %v481 = vsel %vm247, %v480, %v479
      %v482 = vrot.slane %v231, 1
      %v483 = vsel %vm250, %v482, %v481
      %v484 = vrot.slane %v226, 4
      %v485 = vrot.slane %v228, 3
      %v486 = vsel %vm244, %v485, %v484
      %v487 = vrot.slane %v230, 2
      %v488 = vsel %vm247, %v487, %v486
      %v489 = vrot.slane %v232, 1
      %v490 = vsel %vm250, %v489, %v488
      %v491 = vsel %vm291, %v284, %v467
      %v492 = vsel %vm291, %v290, %v474
      %v493 = vsel %vm291, %v483, 0
      %v495 = vsel %vm291, %v490, 0
      %497 = vmatpush.msra.mxu0 0.0
      %498 = vmatpush.msra.mxu0 0.0
      %499 = vmatpush.msra.mxu0 0.0
      %500 = vmatpush.msra.mxu0 0.0
      %501 = vmatpush.msra.mxu0 0.0
      %502 = vmatpush.msra.mxu0 0.0
      %503 = vmatpush.msra.mxu0 0.0
      %504 = vmatpush.msra.mxu0 0.0
      %505 = vmatpush.msra.mxu0 0.0
      %506 = vmatpush.msra.mxu0 0.0
      %507 = vmatpush.msra.mxu0 0.0
      %508 = vmatpush.msra.mxu0 0.0
      %509 = vmatpush.msra.mxu0 0.0
      %510 = vmatpush.msra.mxu0 0.0
      %511 = vmatpush.msra.mxu0 %v493
      %512 = vmatpush.msra.mxu0 %v491
      %513 = vmatmul.f32.gmra.mxu0 %v296
      %v514 = vpop.f32.mrf.mxu0
      %v515 = vadd.f32 0.0, %v514
      %516 = vdwg.mxu0
      %517 = vmatpush.msra.mxu0 0.0
      %518 = vmatpush.msra.mxu0 0.0
      %519 = vmatpush.msra.mxu0 0.0
      %520 = vmatpush.msra.mxu0 0.0
      %521 = vmatpush.msra.mxu0 0.0
      %522 = vmatpush.msra.mxu0 0.0
      %523 = vmatpush.msra.mxu0 0.0
      %524 = vmatpush.msra.mxu0 0.0
      %525 = vmatpush.msra.mxu0 0.0
      %526 = vmatpush.msra.mxu0 0.0
      %527 = vmatpush.msra.mxu0 0.0
      %528 = vmatpush.msra.mxu0 0.0
      %529 = vmatpush.msra.mxu0 0.0
      %530 = vmatpush.msra.mxu0 0.0
      %531 = vmatpush.msra.mxu0 %v495
      %532 = vmatpush.msra.mxu0 %v492
      %533 = vmatmul.f32.gmra.mxu0 %v296
      %v534 = vpop.f32.mrf.mxu0
      %v535 = vadd.f32 0.0, %v534
      %536 = vdwg.mxu0
      %v537 = vmul.f32 %v515, %v345
      %v538 = vmul.f32 %v535, %v345
      %v539 = vadd.f32 %v537, %v351
      %v540 = vadd.f32 %v538, %v351
      %vm541 = vcmp.gt.f32.partialorder %v539, 0.0
      %vm542 = vcmp.gt.f32.partialorder %v540, 0.0
      %v543 = vmul.f32 %v539, 0.01
      %v544 = vmul.f32 %v540, 0.01
      %v545 = vsel %vm541, %v539, %v543
      %v546 = vsel %vm542, %v540, %v544
      %v549 = vsel %vm262, %v243, %v225
      %v550 = vsel %vm265, %v246, %v549
      %v551 = vsel %vm268, %v249, %v550
      %v552 = vsel %vm262, %v252, %v226
      %v553 = vsel %vm265, %v254, %v552
      %v554 = vsel %vm268, %v256, %v553
      %v557 = vsel %vm244, %v261, %v260
      %v558 = vsel %vm247, %v264, %v557
      %v559 = vsel %vm250, %v267, %v558
      %v560 = vsel %vm244, %v271, %v270
      %v561 = vsel %vm247, %v273, %v560
      %v562 = vsel %vm250, %v275, %v561
      %v563 = vsel %vm291, %v396, %v551
      %v564 = vsel %vm291, %v402, %v554
      %v565 = vsel %vm291, %v559, 0
      %v567 = vsel %vm291, %v562, 0
      %569 = vmatpush.msra.mxu0 0.0
      %570 = vmatpush.msra.mxu0 0.0
      %571 = vmatpush.msra.mxu0 0.0
      %572 = vmatpush.msra.mxu0 0.0
      %573 = vmatpush.msra.mxu0 0.0
      %574 = vmatpush.msra.mxu0 0.0
      %575 = vmatpush.msra.mxu0 0.0
      %576 = vmatpush.msra.mxu0 0.0
      %577 = vmatpush.msra.mxu0 0.0
      %578 = vmatpush.msra.mxu0 0.0
      %579 = vmatpush.msra.mxu0 0.0
      %580 = vmatpush.msra.mxu0 0.0
      %581 = vmatpush.msra.mxu0 0.0
      %582 = vmatpush.msra.mxu0 0.0
      %583 = vmatpush.msra.mxu0 %v565
      %584 = vmatpush.msra.mxu0 %v563
      %585 = vmatmul.f32.gmra.mxu0 %v296
      %v586 = vpop.f32.mrf.mxu0
      %v587 = vadd.f32 0.0, %v586
      %588 = vdwg.mxu0
      %589 = vmatpush.msra.mxu0 0.0
      %590 = vmatpush.msra.mxu0 0.0
      %591 = vmatpush.msra.mxu0 0.0
      %592 = vmatpush.msra.mxu0 0.0
      %593 = vmatpush.msra.mxu0 0.0
      %594 = vmatpush.msra.mxu0 0.0
      %595 = vmatpush.msra.mxu0 0.0
      %596 = vmatpush.msra.mxu0 0.0
      %597 = vmatpush.msra.mxu0 0.0
      %598 = vmatpush.msra.mxu0 0.0
      %599 = vmatpush.msra.mxu0 0.0
      %600 = vmatpush.msra.mxu0 0.0
      %601 = vmatpush.msra.mxu0 0.0
      %602 = vmatpush.msra.mxu0 0.0
      %603 = vmatpush.msra.mxu0 %v567
      %604 = vmatpush.msra.mxu0 %v564
      %605 = vmatmul.f32.gmra.mxu0 %v296
      %v606 = vpop.f32.mrf.mxu0
      %v607 = vadd.f32 0.0, %v606
      %608 = vdwg.mxu0
      %v609 = vmul.f32 %v587, %v345
      %v610 = vmul.f32 %v607, %v345
      %v611 = vadd.f32 %v609, %v351
      %v612 = vadd.f32 %v610, %v351
      %vm613 = vcmp.gt.f32.partialorder %v611, 0.0
      %vm614 = vcmp.gt.f32.partialorder %v612, 0.0
      %v615 = vmul.f32 %v611, 0.01
      %v616 = vmul.f32 %v612, 0.01
      %v617 = vsel %vm613, %v611, %v615
      %v618 = vsel %vm614, %v612, %v616
      %v621 = vsel %vm262, %v227, %v361
      %v622 = vsel %vm265, %v363, %v621
      %v623 = vsel %vm268, %v365, %v622
      %v624 = vsel %vm262, %v228, %v367
      %v625 = vsel %vm265, %v369, %v624
      %v626 = vsel %vm268, %v371, %v625
      %v629 = vsel %vm244, %v376, %v375
      %v630 = vsel %vm247, %v378, %v629
      %v631 = vsel %vm250, %v380, %v630
      %v632 = vsel %vm244, %v383, %v382
      %v633 = vsel %vm247, %v385, %v632
      %v634 = vsel %vm250, %v387, %v633
      %v635 = vsel %vm291, %v483, %v623
      %v636 = vsel %vm291, %v490, %v626
      %v637 = vsel %vm291, %v631, 0
      %v639 = vsel %vm291, %v634, 0
      %641 = vmatpush.msra.mxu0 0.0
      %642 = vmatpush.msra.mxu0 0.0
      %643 = vmatpush.msra.mxu0 0.0
      %644 = vmatpush.msra.mxu0 0.0
      %645 = vmatpush.msra.mxu0 0.0
      %646 = vmatpush.msra.mxu0 0.0
      %647 = vmatpush.msra.mxu0 0.0
      %648 = vmatpush.msra.mxu0 0.0
      %649 = vmatpush.msra.mxu0 0.0
      %650 = vmatpush.msra.mxu0 0.0
      %651 = vmatpush.msra.mxu0 0.0
      %652 = vmatpush.msra.mxu0 0.0
      %653 = vmatpush.msra.mxu0 0.0
      %654 = vmatpush.msra.mxu0 0.0
      %655 = vmatpush.msra.mxu0 %v637
      %656 = vmatpush.msra.mxu0 %v635
      %657 = vmatmul.f32.gmra.mxu0 %v296
      %v658 = vpop.f32.mrf.mxu0
      %v659 = vadd.f32 0.0, %v658
      %660 = vdwg.mxu0
      %661 = vmatpush.msra.mxu0 0.0
      %662 = vmatpush.msra.mxu0 0.0
      %663 = vmatpush.msra.mxu0 0.0
      %664 = vmatpush.msra.mxu0 0.0
      %665 = vmatpush.msra.mxu0 0.0
      %666 = vmatpush.msra.mxu0 0.0
      %667 = vmatpush.msra.mxu0 0.0
      %668 = vmatpush.msra.mxu0 0.0
      %669 = vmatpush.msra.mxu0 0.0
      %670 = vmatpush.msra.mxu0 0.0
      %671 = vmatpush.msra.mxu0 0.0
      %672 = vmatpush.msra.mxu0 0.0
      %673 = vmatpush.msra.mxu0 0.0
      %674 = vmatpush.msra.mxu0 0.0
      %675 = vmatpush.msra.mxu0 %v639
      %676 = vmatpush.msra.mxu0 %v636
      %677 = vmatmul.f32.gmra.mxu0 %v296
      %v678 = vpop.f32.mrf.mxu0
      %v679 = vadd.f32 0.0, %v678
      %680 = vdwg.mxu0
      %v681 = vmul.f32 %v659, %v345
      %v682 = vmul.f32 %v679, %v345
      %v683 = vadd.f32 %v681, %v351
      %v684 = vadd.f32 %v682, %v351
      %vm685 = vcmp.gt.f32.partialorder %v683, 0.0
      %vm686 = vcmp.gt.f32.partialorder %v684, 0.0
      %v687 = vmul.f32 %v683, 0.01
      %v688 = vmul.f32 %v684, 0.01
      %v689 = vsel %vm685, %v683, %v687
      %v690 = vsel %vm686, %v684, %v688
      %v693 = vsel %vm262, %v280, %v279
      %v694 = vsel %vm265, %v229, %v693
      %v695 = vsel %vm268, %v283, %v694
      %v696 = vsel %vm262, %v286, %v285
      %v697 = vsel %vm265, %v230, %v696
      %v698 = vsel %vm268, %v289, %v697
      %v701 = vsel %vm244, %v462, %v461
      %v702 = vsel %vm247, %v464, %v701
      %v703 = vsel %vm250, %v466, %v702
      %v704 = vsel %vm244, %v469, %v468
      %v705 = vsel %vm247, %v471, %v704
      %v706 = vsel %vm250, %v473, %v705
      %v707 = vsel %vm291, %v559, %v695
      %v708 = vsel %vm291, %v562, %v698
      %v709 = vsel %vm291, %v703, 0
      %v711 = vsel %vm291, %v706, 0
      %713 = vmatpush.msra.mxu0 0.0
      %714 = vmatpush.msra.mxu0 0.0
      %715 = vmatpush.msra.mxu0 0.0
      %716 = vmatpush.msra.mxu0 0.0
      %717 = vmatpush.msra.mxu0 0.0
      %718 = vmatpush.msra.mxu0 0.0
      %719 = vmatpush.msra.mxu0 0.0
      %720 = vmatpush.msra.mxu0 0.0
      %721 = vmatpush.msra.mxu0 0.0
      %722 = vmatpush.msra.mxu0 0.0
      %723 = vmatpush.msra.mxu0 0.0
      %724 = vmatpush.msra.mxu0 0.0
      %725 = vmatpush.msra.mxu0 0.0
      %726 = vmatpush.msra.mxu0 0.0
      %727 = vmatpush.msra.mxu0 %v709
      %728 = vmatpush.msra.mxu0 %v707
      %729 = vmatmul.f32.gmra.mxu0 %v296
      %v730 = vpop.f32.mrf.mxu0
      %v731 = vadd.f32 0.0, %v730
      %732 = vdwg.mxu0
      %733 = vmatpush.msra.mxu0 0.0
      %734 = vmatpush.msra.mxu0 0.0
      %735 = vmatpush.msra.mxu0 0.0
      %736 = vmatpush.msra.mxu0 0.0
      %737 = vmatpush.msra.mxu0 0.0
      %738 = vmatpush.msra.mxu0 0.0
      %739 = vmatpush.msra.mxu0 0.0
      %740 = vmatpush.msra.mxu0 0.0
      %741 = vmatpush.msra.mxu0 0.0
      %742 = vmatpush.msra.mxu0 0.0
      %743 = vmatpush.msra.mxu0 0.0
      %744 = vmatpush.msra.mxu0 0.0
      %745 = vmatpush.msra.mxu0 0.0
      %746 = vmatpush.msra.mxu0 0.0
      %747 = vmatpush.msra.mxu0 %v711
      %748 = vmatpush.msra.mxu0 %v708
      %749 = vmatmul.f32.gmra.mxu0 %v296
      %v750 = vpop.f32.mrf.mxu0
      %v751 = vadd.f32 0.0, %v750
      %752 = vdwg.mxu0
      %v753 = vmul.f32 %v731, %v345
      %v754 = vmul.f32 %v751, %v345
      %v755 = vadd.f32 %v753, %v351
      %v756 = vadd.f32 %v754, %v351
      %vm757 = vcmp.gt.f32.partialorder %v755, 0.0
      %vm758 = vcmp.gt.f32.partialorder %v756, 0.0
      %v759 = vmul.f32 %v755, 0.01
      %v760 = vmul.f32 %v756, 0.01
      %v761 = vsel %vm757, %v755, %v759
      %v762 = vsel %vm758, %v756, %v760
      %v763 = vld [vmem:[%s2] sm:$0xf]
      %v764 = vld [vmem:[%s4] sm:$0xf]
      %vm765 = vcmask 64512
      %v767 = vsel %vm765, %v763, 0
      %769 = vmatpush.msra.mxu0 0.0
      %770 = vmatpush.msra.mxu0 0.0
      %771 = vmatpush.msra.mxu0 0.0
      %772 = vmatpush.msra.mxu0 0.0
      %773 = vmatpush.msra.mxu0 0.0
      %774 = vmatpush.msra.mxu0 0.0
      %775 = vmatpush.msra.mxu0 0.0
      %776 = vmatpush.msra.mxu0 0.0
      %777 = vmatpush.msra.mxu0 0.0
      %778 = vmatpush.msra.mxu0 0.0
      %779 = vmatpush.msra.mxu0 0.0
      %780 = vmatpush.msra.mxu0 0.0
      %781 = vmatpush.msra.mxu0 0.0
      %782 = vmatpush.msra.mxu0 0.0
      %783 = vmatpush.msra.mxu0 0.0
      %784 = vmatpush.msra.mxu0 %v707
      %785 = vmatmul.f32.gmra.mxu0 %v767
      %v786 = vpop.f32.mrf.mxu0
      %v787 = vadd.f32 0.0, %v786
      %788 = vdwg.mxu0
      %789 = vmatpush.msra.mxu0 0.0
      %790 = vmatpush.msra.mxu0 0.0
      %791 = vmatpush.msra.mxu0 0.0
      %792 = vmatpush.msra.mxu0 0.0
      %793 = vmatpush.msra.mxu0 0.0
      %794 = vmatpush.msra.mxu0 0.0
      %795 = vmatpush.msra.mxu0 0.0
      %796 = vmatpush.msra.mxu0 0.0
      %797 = vmatpush.msra.mxu0 0.0
      %798 = vmatpush.msra.mxu0 0.0
      %799 = vmatpush.msra.mxu0 0.0
      %800 = vmatpush.msra.mxu0 0.0
      %801 = vmatpush.msra.mxu0 0.0
      %802 = vmatpush.msra.mxu0 0.0
      %803 = vmatpush.msra.mxu0 0.0
      %804 = vmatpush.msra.mxu0 %v708
      %805 = vmatmul.f32.gmra.mxu0 %v767
      %v806 = vpop.f32.mrf.mxu0
      %v807 = vadd.f32 0.0, %v806
      %808 = vdwg.mxu0
      %810 = vset.pattern.permute.xlu0 0
      %811 = vperm.xlu0 %810, %v764
      %v812 = vpop.permute.xlu0 %811
      %v814 = vmul.f32 %v787, %v812
      %v815 = vmul.f32 %v807, %v812
      %816 = vset.pattern.permute.xlu0 1
      %817 = vperm.xlu0 %816, %v764
      %v818 = vpop.permute.xlu0 %817
      %v820 = vadd.f32 %v814, %v818
      %v821 = vadd.f32 %v815, %v818
      %vm822 = vcmp.gt.f32.partialorder %v820, 0.0
      %vm823 = vcmp.gt.f32.partialorder %v821, 0.0
      %v824 = vmul.f32 %v820, 0.01
      %v825 = vmul.f32 %v821, 0.01
      %v826 = vsel %vm822, %v820, %v824
      %v827 = vsel %vm823, %v821, %v825
      %v830 = vsel %vm262, %v392, %v391
      %v831 = vsel %vm265, %v394, %v830
      %v832 = vsel %vm268, %v231, %v831
      %v833 = vsel %vm262, %v398, %v397
      %v834 = vsel %vm265, %v400, %v833
      %v835 = vsel %vm268, %v232, %v834
      %v838 = vsel %vm291, %v631, %v832
      %v839 = vsel %vm291, %v634, %v835
      %840 = vmatpush.msra.mxu0 0.0
      %841 = vmatpush.msra.mxu0 0.0
      %842 = vmatpush.msra.mxu0 0.0
      %843 = vmatpush.msra.mxu0 0.0
      %844 = vmatpush.msra.mxu0 0.0
      %845 = vmatpush.msra.mxu0 0.0
      %846 = vmatpush.msra.mxu0 0.0
      %847 = vmatpush.msra.mxu0 0.0
      %848 = vmatpush.msra.mxu0 0.0
      %849 = vmatpush.msra.mxu0 0.0
      %850 = vmatpush.msra.mxu0 0.0
      %851 = vmatpush.msra.mxu0 0.0
      %852 = vmatpush.msra.mxu0 0.0
      %853 = vmatpush.msra.mxu0 0.0
      %854 = vmatpush.msra.mxu0 0.0
      %855 = vmatpush.msra.mxu0 %v838
      %856 = vmatmul.f32.gmra.mxu0 %v767
      %v857 = vpop.f32.mrf.mxu0
      %v858 = vadd.f32 0.0, %v857
      %859 = vdwg.mxu0
      %860 = vmatpush.msra.mxu0 0.0
      %861 = vmatpush.msra.mxu0 0.0
      %862 = vmatpush.msra.mxu0 0.0
      %863 = vmatpush.msra.mxu0 0.0
      %864 = vmatpush.msra.mxu0 0.0
      %865 = vmatpush.msra.mxu0 0.0
      %866 = vmatpush.msra.mxu0 0.0
      %867 = vmatpush.msra.mxu0 0.0
      %868 = vmatpush.msra.mxu0 0.0
      %869 = vmatpush.msra.mxu0 0.0
      %870 = vmatpush.msra.mxu0 0.0
      %871 = vmatpush.msra.mxu0 0.0
      %872 = vmatpush.msra.mxu0 0.0
      %873 = vmatpush.msra.mxu0 0.0
      %874 = vmatpush.msra.mxu0 0.0
      %875 = vmatpush.msra.mxu0 %v839
      %876 = vmatmul.f32.gmra.mxu0 %v767
      %v877 = vpop.f32.mrf.mxu0
      %v878 = vadd.f32 0.0, %v877
      %879 = vdwg.mxu0
      %v880 = vmul.f32 %v858, %v812
      %v881 = vmul.f32 %v878, %v812
      %v882 = vadd.f32 %v880, %v818
      %v883 = vadd.f32 %v881, %v818
      %vm884 = vcmp.gt.f32.partialorder %v882, 0.0
      %vm885 = vcmp.gt.f32.partialorder %v883, 0.0
      %v886 = vmul.f32 %v882, 0.01
      %v887 = vmul.f32 %v883, 0.01
      %v888 = vsel %vm884, %v882, %v886
      %v889 = vsel %vm885, %v883, %v887
      %v890 = vsub.f32 %v761, %v826
      %v891 = vsub.f32 %v762, %v827
      %v892 = vsub.f32 %v761, %v888
      %v893 = vsub.f32 %v762, %v889
      %v896 = vrot.slane %v360, 7
      %vm897 = vcmask 1040384
      %v898 = vsel %vm897, %v359, %v896
      %v899 = vsel %vm244, %v359, %v896
      %v900 = vrot.slane %v899, 1
      %v901 = vsel %vm247, %v359, %v896
      %v902 = vrot.slane %v901, 2
      %v903 = vsel %vm250, %v359, %v896
      %v904 = vrot.slane %v903, 3
      %v907 = vrot.slane %v458, 7
      %v908 = vsel %vm897, %v457, %v907
      %v909 = vsel %vm244, %v457, %v907
      %v910 = vrot.slane %v909, 1
      %v911 = vsel %vm247, %v457, %v907
      %v912 = vrot.slane %v911, 2
      %v913 = vsel %vm250, %v457, %v907
      %v914 = vrot.slane %v913, 3
      %v917 = vrot.slane %v546, 7
      %v918 = vsel %vm897, %v545, %v917
      %v919 = vsel %vm244, %v545, %v917
      %v920 = vrot.slane %v919, 1
      %v921 = vsel %vm247, %v545, %v917
      %v922 = vrot.slane %v921, 2
      %v923 = vsel %vm250, %v545, %v917
      %v924 = vrot.slane %v923, 3
      %v927 = vrot.slane %v618, 7
      %v928 = vsel %vm897, %v617, %v927
      %v929 = vsel %vm244, %v617, %v927
      %v930 = vrot.slane %v929, 1
      %v931 = vsel %vm247, %v617, %v927
      %v932 = vrot.slane %v931, 2
      %v933 = vsel %vm250, %v617, %v927
      %v934 = vrot.slane %v933, 3
      %v937 = vrot.slane %v690, 7
      %v938 = vsel %vm897, %v689, %v937
      %v939 = vsel %vm244, %v689, %v937
      %v940 = vrot.slane %v939, 1
      %v941 = vsel %vm247, %v689, %v937
      %v942 = vrot.slane %v941, 2
      %v943 = vsel %vm250, %v689, %v937
      %v944 = vrot.slane %v943, 3
      %v947 = vrot.slane %v891, 7
      %v948 = vsel %vm897, %v890, %v947
      %v949 = vsel %vm244, %v890, %v947
      %v950 = vrot.slane %v949, 1
      %v951 = vsel %vm247, %v890, %v947
      %v952 = vrot.slane %v951, 2
      %v953 = vsel %vm250, %v890, %v947
      %v954 = vrot.slane %v953, 3
      %v957 = vrot.slane %v893, 7
      %v958 = vsel %vm897, %v892, %v957
      %v959 = vsel %vm244, %v892, %v957
      %v960 = vrot.slane %v959, 1
      %v961 = vsel %vm247, %v892, %v957
      %v962 = vrot.slane %v961, 2
      %v963 = vsel %vm250, %v892, %v957
      %v964 = vrot.slane %v963, 3
      %v965 = vperm.slane %v898, 0
      %v966 = vperm.slane %v898, 1
      %v967 = vperm.slane %v900, 0
      %v968 = vperm.slane %v900, 1
      %v969 = vperm.slane %v902, 0
      %v970 = vperm.slane %v902, 1
      %v971 = vperm.slane %v904, 0
      %v972 = vperm.slane %v904, 1
      %v981 = vperm.slane %v908, 0
      %v982 = vperm.slane %v908, 1
      %v983 = vperm.slane %v910, 0
      %v984 = vperm.slane %v910, 1
      %v985 = vperm.slane %v912, 0
      %v986 = vperm.slane %v912, 1
      %v987 = vperm.slane %v914, 0
      %v988 = vperm.slane %v914, 1
      %v997 = vperm.slane %v918, 0
      %v998 = vperm.slane %v918, 1
      %v999 = vperm.slane %v920, 0
      %v1000 = vperm.slane %v920, 1
      %v1001 = vperm.slane %v922, 0
      %v1002 = vperm.slane %v922, 1
      %v1003 = vperm.slane %v924, 0
      %v1004 = vperm.slane %v924, 1
      %v1013 = vperm.slane %v928, 0
      %v1014 = vperm.slane %v928, 1
      %v1015 = vperm.slane %v930, 0
      %v1016 = vperm.slane %v930, 1
      %v1017 = vperm.slane %v932, 0
      %v1018 = vperm.slane %v932, 1
      %v1019 = vperm.slane %v934, 0
      %v1020 = vperm.slane %v934, 1
      %v1029 = vperm.slane %v938, 0
      %v1030 = vperm.slane %v938, 1
      %v1031 = vperm.slane %v940, 0
      %v1032 = vperm.slane %v940, 1
      %v1033 = vperm.slane %v942, 0
      %v1034 = vperm.slane %v942, 1
      %v1035 = vperm.slane %v944, 0
      %v1036 = vperm.slane %v944, 1
      %v1045 = vperm.slane %v948, 0
      %v1046 = vperm.slane %v948, 1
      %v1047 = vperm.slane %v950, 0
      %v1048 = vperm.slane %v950, 1
      %v1049 = vperm.slane %v952, 0
      %v1050 = vperm.slane %v952, 1
      %v1051 = vperm.slane %v954, 0
      %v1052 = vperm.slane %v954, 1
      %v1061 = vperm.slane %v958, 0
      %v1062 = vperm.slane %v958, 1
      %v1063 = vperm.slane %v960, 0
      %v1064 = vperm.slane %v960, 1
      %v1065 = vperm.slane %v962, 0
      %v1066 = vperm.slane %v962, 1
      %v1067 = vperm.slane %v964, 0
      %v1068 = vperm.slane %v964, 1
      %v1077 = vsel %vm897, %v965, %v981
      %v1078 = vsel %vm897, %v966, %v982
      %v1079 = vsel %vm897, %v967, %v983
      %v1080 = vsel %vm897, %v968, %v984
      %v1081 = vsel %vm897, %v969, %v985
      %v1082 = vsel %vm897, %v970, %v986
      %v1083 = vsel %vm897, %v971, %v987
      %v1084 = vsel %vm897, %v972, %v988
      %vm1085 = vcmask 1041408
      %v1086 = vsel %vm1085, %v1077, %v997
      %v1087 = vsel %vm1085, %v1078, %v998
      %v1088 = vsel %vm1085, %v1079, %v999
      %v1089 = vsel %vm1085, %v1080, %v1000
      %v1090 = vsel %vm1085, %v1081, %v1001
      %v1091 = vsel %vm1085, %v1082, %v1002
      %v1092 = vsel %vm1085, %v1083, %v1003
      %v1093 = vsel %vm1085, %v1084, %v1004
      %vm1094 = vcmask 1042432
      %v1095 = vsel %vm1094, %v1086, %v1013
      %v1096 = vsel %vm1094, %v1087, %v1014
      %v1097 = vsel %vm1094, %v1088, %v1015
      %v1098 = vsel %vm1094, %v1089, %v1016
      %v1099 = vsel %vm1094, %v1090, %v1017
      %v1100 = vsel %vm1094, %v1091, %v1018
      %v1101 = vsel %vm1094, %v1092, %v1019
      %v1102 = vsel %vm1094, %v1093, %v1020
      %v1103 = vsel %vm291, %v1095, %v1029
      %v1104 = vsel %vm291, %v1096, %v1030
      %v1105 = vsel %vm291, %v1097, %v1031
      %v1106 = vsel %vm291, %v1098, %v1032
      %v1107 = vsel %vm291, %v1099, %v1033
      %v1108 = vsel %vm291, %v1100, %v1034
      %v1109 = vsel %vm291, %v1101, %v1035
      %v1110 = vsel %vm291, %v1102, %v1036
      %vm1111 = vcmask 1044480
      %v1112 = vsel %vm1111, %v1103, %v1045
      %v1113 = vsel %vm1111, %v1104, %v1046
      %v1114 = vsel %vm1111, %v1105, %v1047
      %v1115 = vsel %vm1111, %v1106, %v1048
      %v1116 = vsel %vm1111, %v1107, %v1049
      %v1117 = vsel %vm1111, %v1108, %v1050
      %v1118 = vsel %vm1111, %v1109, %v1051
      %v1119 = vsel %vm1111, %v1110, %v1052
      %vm1120 = vcmask 1045504
      %v1121 = vsel %vm1120, %v1112, %v1061
      %v1122 = vsel %vm1120, %v1113, %v1062
      %v1123 = vsel %vm1120, %v1114, %v1063
      %v1124 = vsel %vm1120, %v1115, %v1064
      %v1125 = vsel %vm1120, %v1116, %v1065
      %v1126 = vsel %vm1120, %v1117, %v1066
      %v1127 = vsel %vm1120, %v1118, %v1067
      %v1128 = vsel %vm1120, %v1119, %v1068
      %vm1129 = vcmask 1046528
      %v1130 = vsel %vm1129, %v1121, %v1061
      %v1131 = vsel %vm1129, %v1122, %v1062
      %v1132 = vsel %vm1129, %v1123, %v1063
      %v1133 = vsel %vm1129, %v1124, %v1064
      %v1134 = vsel %vm1129, %v1125, %v1065
      %v1135 = vsel %vm1129, %v1126, %v1066
      %v1136 = vsel %vm1129, %v1127, %v1067
      %v1137 = vsel %vm1129, %v1128, %v1068
      %1138 = vst [vmem:[%s224] sm:$0xff] %v1130
      %1139 = vst [vmem:[%s224 + $0x8] sm:$0xff] %v1131
      %1140 = vst [vmem:[%s224 + $0x10] sm:$0xff] %v1132
      %1141 = vst [vmem:[%s224 + $0x18] sm:$0xff] %v1133
      %1142 = vst [vmem:[%s224 + $0x20] sm:$0xff] %v1134
      %1143 = vst [vmem:[%s224 + $0x28] sm:$0xff] %v1135
      %1144 = vst [vmem:[%s224 + $0x30] sm:$0xff] %v1136
      %1145 = vst [vmem:[%s224 + $0x38] sm:$0xff] %v1137
      %p1146 = scmp.lt.s32.totalorder %s16, 1
      %s1147 = scalar_select %p1146, %s16, 1
      %s1148 = smul.addr %s1147, 8
      %s1149 = smul.addr %s1148, 8
      %s1150 = scalar_lea.vmem %s5, %s1149
      // Predicated region
      $region41: #{rnet_forward.3} parent=39 // pred_check
        %p1151 = pneg %p144
      $region42: #{rnet_forward.3} parent=39 // pred_check_branch
        %1153 = sbr.rel (%p1151) target = $region44
      $region43: #{rnet_forward.3} parent=39 // pred_region
        _
      $region44: #{rnet_forward.3} parent=39 // pred_fallthru
        _
    $region40: #{rnet_forward.3} parent=5 // pred_fallthru
      _
    %p1154 = scmp.le.s32.totalorder 2, %s11
    // Predicated region
    $region45: #{rnet_forward.3} parent=5 // pred_check
      %p1155 = pneg %p1154
    $region46: #{rnet_forward.3} parent=5 // pred_check_branch
      %1157 = sbr.rel (%p1155) target = $region48
    $region47: #{rnet_forward.3} parent=5 // pred_region
      %s1158 = ssub.s32 %s11, 2
      // Predicated region
      $region49: #{rnet_forward.3} parent=47 // pred_check
        %p1159 = pneg %p150
      $region50: #{rnet_forward.3} parent=47 // pred_check_branch
        %1161 = sbr.rel (%p1159) target = $region52
      $region51: #{rnet_forward.3} parent=47 // pred_region
        %p1162 = scmp.lt.s32.totalorder %s17, 1
        %s1163 = scalar_select %p1162, %s17, 1
        %s1164 = smul.addr %s1163, 8
        %s1165 = smul.addr %s1164, 8
        %s1166 = scalar_lea.vmem %s5, %s1165
      $region52: #{rnet_forward.3} parent=47 // pred_fallthru
        _
    $region48: #{rnet_forward.3} parent=5 // pred_fallthru
      _
  $region6: #{rnet_forward.3} parent=0 // loop_footer
    %s15 = sadd.s32 1, %s11
  $region7: #{rnet_forward.3} parent=0 // loop_footer_branch
    %10 = sbr.rel target = $region3
  $region8: #{rnet_forward.3} parent=0 // loop_exit
    _

</llo_original>
